<compile_context>
chip_gen: v5e
topology: v5e:2x2
jax: 0.10.0
libtpu: 0.0.40
codegen_flags: <defaults>
</compile_context>

<pallas_src>
import jax
import jax.numpy as jnp
from jax import lax
from jax.experimental import pallas as pl
from jax.experimental.pallas import tpu as pltpu


def _conv1x1_kernel(w_ref, x_ref, o_ref):
    # w_ref: (Cout_blk, Cin) bf16 -- weight rows for this grid point
    # x_ref: (Cin, M)        bf16 -- channel-major activations (shared)
    # o_ref: (Cout_blk, M)   f32
    o_ref[...] = lax.dot_general(
        w_ref[...],
        x_ref[...],
        dimension_numbers=(((1,), (0,)), ((), ())),
        preferred_element_type=jnp.float32,
    ).astype(o_ref.dtype)


def conv1x1(x_nchw, weight_oihw):
    """1x1 conv (stride 1, no bias) via a Pallas matmul, bf16 operands / f32 accum.

    x_nchw:      (N, Cin, H, W)    float32
    weight_oihw: (Cout, Cin, 1, 1) float32
    returns:     (N, Cout, H, W)   float32
    """
    N, Cin, H, W = x_nchw.shape
    Cout = weight_oihw.shape[0]
    assert weight_oihw.shape == (Cout, Cin, 1, 1)

    M = N * H * W

    # Channel-major 2D views.  For N == 1 (the module's case) these are pure
    # reshapes -- no HBM traffic.  General N needs a single transpose.
    if N == 1:
        x2d = x_nchw.reshape(Cin, M)
    else:
        x2d = jnp.transpose(x_nchw, (1, 0, 2, 3)).reshape(Cin, M)
    w2d = weight_oihw.reshape(Cout, Cin)

    # bf16 in HBM (halves the dominant weight transfer); f32 accumulation in-kernel.
    x2d = x2d.astype(jnp.bfloat16)
    w2d = w2d.astype(jnp.bfloat16)

    # Split Cout across 2 parallel grid points so both TensorCores work on v7x.
    # (192 rows per block keeps the sublane-divisibility constraint: 192 % 8 == 0.)
    n_blocks = 2 if (Cout % 2 == 0 and (Cout // 2) % 8 == 0) else 1
    cout_blk = Cout // n_blocks

    out2d = pl.pallas_call(
        _conv1x1_kernel,
        out_shape=jax.ShapeDtypeStruct((Cout, M), jnp.float32),
        grid=(n_blocks,),
        in_specs=[
            # Per-grid-point weight rows.
            pl.BlockSpec((cout_blk, Cin), lambda i: (i, 0)),
            # Whole activation, identical block index every step -> DMA'd once.
            pl.BlockSpec((Cin, M), lambda i: (0, 0)),
        ],
        out_specs=pl.BlockSpec((cout_blk, M), lambda i: (i, 0)),
        compiler_params=pltpu.CompilerParams(
            dimension_semantics=("parallel",),
        ),
        cost_estimate=pl.CostEstimate(
            flops=2 * M * Cin * Cout,
            transcendentals=0,
            bytes_accessed=2 * (Cout * Cin + Cin * M) + 4 * Cout * M,
        ),
    )(w2d, x2d)

    out2d = out2d.astype(x_nchw.dtype)
    # (Cout, M) -> NCHW.  For N == 1 this is again a pure reshape.
    if N == 1:
        return out2d.reshape(1, Cout, H, W)
    return jnp.transpose(out2d.reshape(Cout, N, H, W), (1, 0, 2, 3))


if __name__ == "__main__":
    key = jax.random.PRNGKey(0)
    kx, kw = jax.random.split(key)

    # Shapes implied by the module: x779 = [1, 2304, 7, 7], Conv2d(2304 -> 384).
    N, Cin, H, W, Cout = 1, 2304, 7, 7, 384

    x = jax.random.normal(kx, (N, Cin, H, W), dtype=jnp.float32)
    # Deterministic weight init (kaiming-uniform-like scale for a 1x1 conv).
    bound = 1.0 / (Cin ** 0.5)
    weight = jax.random.uniform(
        kw, (Cout, Cin, 1, 1), minval=-bound, maxval=bound, dtype=jnp.float32
    )

    out = jax.jit(conv1x1)(x, weight)
    out = jax.block_until_ready(out)
    assert out.shape == (N, Cout, H, W)

    # Reference in f32 (loose tolerance: operands travel as bf16, accum in f32).
    ref_f32 = jnp.einsum("nchw,oc->nohw", x, weight.reshape(Cout, Cin))
    assert jnp.allclose(out, ref_f32, atol=2e-2, rtol=2e-2)

    # Tight check against a bf16-operand / f32-accum reference (same numerics).
    ref_bf16 = jnp.einsum(
        "nchw,oc->nohw",
        x.astype(jnp.bfloat16).astype(jnp.float32),
        weight.reshape(Cout, Cin).astype(jnp.bfloat16).astype(jnp.float32),
    )
    assert jnp.allclose(out, ref_bf16, atol=2e-3, rtol=2e-3)

    print("KERNEL_OK")
</pallas_src>

<mosaic_0001>
module attributes {stable_mosaic.version = 11 : i64} {
  func.func @_conv1x1_kernel(%arg0: i32, %arg1: memref<192x2304xbf16, #tpu.memory_space<vmem>>, %arg2: memref<2304x49xbf16, #tpu.memory_space<vmem>>, %arg3: memref<192x49xf32, #tpu.memory_space<vmem>>) attributes {dimension_semantics = [#tpu.dimension_semantics<parallel>], iteration_bounds = array<i64: 2>, scalar_prefetch = 0 : i64, scratch_operands = 0 : i64, tpu.core_type = #tpu.core_type<tc>, window_params = [{transform_indices = @transform_0, window_bounds = array<i64: 192, 2304>}, {pipeline_mode = #tpu.pipeline_mode<synchronous>, transform_indices = @transform_1, window_bounds = array<i64: 2304, 49>}, {transform_indices = @transform_2, window_bounds = array<i64: 192, 49>}]} {
    %c0 = arith.constant 0 : index
    %c0_0 = arith.constant 0 : index
    %0 = vector.load %arg1[%c0, %c0_0] : memref<192x2304xbf16, #tpu.memory_space<vmem>>, vector<192x2304xbf16>
    %c0_1 = arith.constant 0 : index
    %c0_2 = arith.constant 0 : index
    %1 = vector.load %arg2[%c0_1, %c0_2] : memref<2304x49xbf16, #tpu.memory_space<vmem>>, vector<2304x49xbf16>
    %cst = arith.constant dense<0.000000e+00> : vector<192x49xf32>
    %2 = tpu.matmul %0, %1, %cst {dimension_numbers = #tpu.dot_dimension_numbers<[1], [0], [0], [1], [0, 0, 1, 1], [], []>} : vector<192x2304xbf16>, vector<2304x49xbf16>, vector<192x49xf32> -> vector<192x49xf32>
    %c0_3 = arith.constant 0 : index
    %c0_4 = arith.constant 0 : index
    %3 = vector.load %arg3[%c0_3, %c0_4] : memref<192x49xf32, #tpu.memory_space<vmem>>, vector<192x49xf32>
    tpu.vector_store %arg3[%c0_3, %c0_4], %2 {strides = array<i32>} : memref<192x49xf32, #tpu.memory_space<vmem>>, vector<192x49xf32>,
    return
  }
  func.func @transform_0(%arg0: i32) -> (i32, i32) {
    %c0_i32 = arith.constant 0 : i32
    %c0_i32_0 = arith.constant 0 : i32
    return %arg0, %c0_i32 : i32, i32
  }
  func.func @transform_1(%arg0: i32) -> (i32, i32) {
    %c0_i32 = arith.constant 0 : i32
    %c0_i32_0 = arith.constant 0 : i32
    %c0_i32_1 = arith.constant 0 : i32
    return %c0_i32, %c0_i32_0 : i32, i32
  }
  func.func @transform_2(%arg0: i32) -> (i32, i32) {
    %c0_i32 = arith.constant 0 : i32
    %c0_i32_0 = arith.constant 0 : i32
    return %arg0, %c0_i32 : i32, i32
  }
}

</mosaic_0001>

<llo_original>
// kernel: conv1x1.1
$region0: #{conv1x1.1}
  #allocation0 [shape = 'u32[]', space=smem, size = 0x4, offset = 0x4, fixed_abs, tag = 'smem constant byte address 0x4 - core index']
  #allocation1 [shape = 'u32[72,128]{1,0:T(1,128)}', space=vmem, size = 0x9000, scoped, tag = 'internal scratch']
  %s0 = inlined_call_operand.vmem [shape: bf16[384,2304], index: 0, kind: input, shape index: {}]
  %s1 = inlined_call_operand.vmem [shape: bf16[2304,49], index: 1, kind: input, shape index: {}]
  %s2 = inlined_call_operand.vmem [shape: f32[384,49], index: 2, kind: output, shape index: {}]
  %s3 = sld [smem:[#allocation0]]
  $region41: #{conv1x1.1} parent=0
    _
  %s5 = ssub.s32 1, %s3
  %s6 = scalar_select 0, %s5, %s3
  loop: start=0, step=1, limit=4
  $region2: #{conv1x1.1} parent=0 // loop_pre_header
    _
  $region3: #{conv1x1.1} parent=0 // loop_header
    %s8 = sphi 0, %s12
    %p9 = scmp.ge.s32.totalorder %s8, 4
    %s18 = sphi 0, %s20
    %s21 = sphi 0, %s18
    %s22 = sphi 0, %s21
    %s38 = sphi 0, %s22
    %s42 = sphi 0, %s42
    %s44 = sphi 0, %s42
    %s45 = sphi 0, %s44
    %s59 = sphi 0, %s45
    %s65 = sphi 0, %s67
    %s68 = sphi 0, %s65
    %s69 = sphi 0, %s68
    %s85 = sphi 0, %s69
  $region4: #{conv1x1.1} parent=0 // loop_header_branch
    %11 = sbr.rel (%p9) target = $region8
  $region5: #{conv1x1.1} parent=0 // loop_body
    %s13 = ssub.s32 %s8, 1
    %s14 = ssub.s32 %s8, 2
    %s15 = sadd.s32 %s8, 1
    %s16 = ssub.s32 %s8, %s15
    %p17 = scmp.eq.s32.totalorder %s16, 0
    %s19 = sadd.s32 %s18, 1
    %s20 = scalar_select %p17, %s18, %s19
    %p23 = pneg %p17
    %p24 = scmp.eq.s32.totalorder %s8, 1
    %p25 = por %p23, %p24
    %p26 = scmp.ne.s32.totalorder %s18, %s21
    %p27 = scmp.eq.s32.totalorder %s8, 0
    %p28 = por %p26, %p27
    %p29 = scmp.ne.s32.totalorder %s18, %s21
    %p30 = scmp.eq.s32.totalorder %s13, 1
    %p31 = por %p29, %p30
    %p32 = scmp.ne.s32.totalorder %s21, %s22
    %p33 = scmp.eq.s32.totalorder %s13, 0
    %p34 = por %p32, %p33
    %p35 = scmp.ne.s32.totalorder %s21, %s22
    %p36 = scmp.eq.s32.totalorder %s14, 1
    %p37 = por %p35, %p36
    %p39 = scmp.ne.s32.totalorder %s22, %s38
    %p40 = scmp.eq.s32.totalorder %s14, 0
    %p41 = por %p39, %p40
    %s43 = sadd.s32 %s42, 1
    %p46 = scmp.eq.s32.totalorder %s8, 1
    %p47 = scmp.ne.s32.totalorder %s42, %s44
    %p48 = scmp.eq.s32.totalorder %s8, 0
    %p49 = por %p47, %p48
    %p50 = scmp.ne.s32.totalorder %s42, %s44
    %p51 = scmp.eq.s32.totalorder %s13, 1
    %p52 = por %p50, %p51
    %p53 = scmp.ne.s32.totalorder %s44, %s45
    %p54 = scmp.eq.s32.totalorder %s13, 0
    %p55 = por %p53, %p54
    %p56 = scmp.ne.s32.totalorder %s44, %s45
    %p57 = scmp.eq.s32.totalorder %s14, 1
    %p58 = por %p56, %p57
    %p60 = scmp.ne.s32.totalorder %s45, %s59
    %p61 = scmp.eq.s32.totalorder %s14, 0
    %p62 = por %p60, %p61
    %s63 = ssub.s32 %s8, %s15
    %p64 = scmp.eq.s32.totalorder %s63, 0
    %s66 = sadd.s32 %s65, 1
    %s67 = scalar_select %p64, %s65, %s66
    %p70 = pneg %p64
    %p71 = scmp.eq.s32.totalorder %s8, 1
    %p72 = por %p70, %p71
    %p73 = scmp.ne.s32.totalorder %s65, %s68
    %p74 = scmp.eq.s32.totalorder %s8, 0
    %p75 = por %p73, %p74
    %p76 = scmp.ne.s32.totalorder %s65, %s68
    %p77 = scmp.eq.s32.totalorder %s13, 1
    %p78 = por %p76, %p77
    %p79 = scmp.ne.s32.totalorder %s68, %s69
    %p80 = scmp.eq.s32.totalorder %s13, 0
    %p81 = por %p79, %p80
    %p82 = scmp.ne.s32.totalorder %s68, %s69
    %p83 = scmp.eq.s32.totalorder %s14, 1
    %p84 = por %p82, %p83
    %p86 = scmp.ne.s32.totalorder %s69, %s85
    %p87 = scmp.eq.s32.totalorder %s14, 0
    %p88 = por %p86, %p87
    %p89 = scmp.le.s32.totalorder 1, %s8
    %p90 = scmp.lt.s32.totalorder %s8, 3
    %p91 = pnand %p89, %p90
    %p92 = pneg %p91
    // Predicated region
    $region9: #{conv1x1.1} parent=5 // pred_check
      _
    $region10: #{conv1x1.1} parent=5 // pred_check_branch
      %94 = sbr.rel (%p91) target = $region12
    $region11: #{conv1x1.1} parent=5 // pred_region
      %s95 = ssub.s32 %s8, 1
      // Predicated region
      $region13: #{conv1x1.1} parent=11 // pred_check
        %p96 = pneg %p55
      $region14: #{conv1x1.1} parent=11 // pred_check_branch
        %98 = sbr.rel (%p96) target = $region16
      $region15: #{conv1x1.1} parent=11 // pred_region
        _
      $region16: #{conv1x1.1} parent=11 // pred_fallthru
        _
    $region12: #{conv1x1.1} parent=5 // pred_fallthru
      _
    %p99 = scmp.lt.s32.totalorder %s8, 2
    // Predicated region
    $region17: #{conv1x1.1} parent=5 // pred_check
      %p100 = pneg %p99
    $region18: #{conv1x1.1} parent=5 // pred_check_branch
      %102 = sbr.rel (%p100) target = $region20
    $region19: #{conv1x1.1} parent=5 // pred_region
      // Predicated region
      $region21: #{conv1x1.1} parent=19 // pred_check
        %p103 = pneg %p28
      $region22: #{conv1x1.1} parent=19 // pred_check_branch
        %105 = sbr.rel (%p103) target = $region24
      $region23: #{conv1x1.1} parent=19 // pred_region
        %s106 = smul.u32 24, %s8
        %p107 = scmp.lt.s32.totalorder %s106, 47
        %s108 = scalar_select %p107, %s106, 47
        %s109 = smul.addr %s108, 18
        %s110 = smul.addr %s109, 4
        %s111 = scalar_lea.vmem %s0, %s110
        %s112 = smul.u32 24, %s8
      $region24: #{conv1x1.1} parent=19 // pred_fallthru
        _
    $region20: #{conv1x1.1} parent=5 // pred_fallthru
      _
    %p113 = scmp.le.s32.totalorder 1, %s8
    %p114 = scmp.lt.s32.totalorder %s8, 3
    %p115 = pnand %p113, %p114
    %p116 = pneg %p115
    // Predicated region
    $region25: #{conv1x1.1} parent=5 // pred_check
      _
    $region26: #{conv1x1.1} parent=5 // pred_check_branch
      %118 = sbr.rel (%p115) target = $region28
    $region27: #{conv1x1.1} parent=5 // pred_region
      %s119 = ssub.s32 %s8, 1
      %s120 = smul.u32 24, %s13
      %p121 = scmp.lt.s32.totalorder %s120, 47
      %s122 = scalar_select %p121, %s120, 47
      %s123 = smul.addr %s122, 18
      %s124 = smul.addr %s123, 4
      %s125 = scalar_lea.vmem %s0, %s124
      %p126 = pneg %p34
      %p127 = pneg %p31
      %p128 = pneg %p55
      %p129 = pneg %p52
      %p130 = pneg %p81
      %p131 = pneg %p78
      %s132 = smul.u32 24, %s13
      %p133 = scmp.lt.s32.totalorder %s132, 47
      %s134 = scalar_select %p133, %s132, 47
      %s135 = smul.addr %s134, 8
      %s136 = scalar_lea.vmem %s2, %s135
      %s137 = smul.u32 24, %s13
      %p138 = scmp.lt.s32.totalorder %s137, 47
      %s139 = scalar_select %p138, %s137, 47
      %s140 = smul.addr %s139, 18
      %s141 = smul.addr %s140, 4
      %s142 = scalar_lea.vmem %s0, %s141
      %s143 = smul.u32 24, %s13
      %s144 = smul.u32 24, %s13
      %p145 = scmp.lt.s32.totalorder %s144, 47
      %s146 = scalar_select %p145, %s144, 47
      %s147 = smul.addr %s146, 8
      %s148 = scalar_lea.vmem %s2, %s147
      %s149 = smul.u32 24, %s13
      %v150 = vld [vmem:[%s142] sm:$0xff]
      %v151 = vld [vmem:[%s142 + $0x8] sm:$0xff]
      %v152 = vld [vmem:[%s142 + $0x10] sm:$0xff]
      %v153 = vld [vmem:[%s142 + $0x18] sm:$0xff]
      %v154 = vld [vmem:[%s142 + $0x20] sm:$0xff]
      %v155 = vld [vmem:[%s142 + $0x28] sm:$0xff]
      %v156 = vld [vmem:[%s142 + $0x30] sm:$0xff]
      %v157 = vld [vmem:[%s142 + $0x38] sm:$0xff]
      %v158 = vld [vmem:[%s142 + $0x40] sm:$0xff]
      %v159 = vld [vmem:[%s142 + $0x48] sm:$0xff]
      %v160 = vld [vmem:[%s142 + $0x50] sm:$0xff]
      %v161 = vld [vmem:[%s142 + $0x58] sm:$0xff]
      %v162 = vld [vmem:[%s142 + $0x60] sm:$0xff]
      %v163 = vld [vmem:[%s142 + $0x68] sm:$0xff]
      %v164 = vld [vmem:[%s142 + $0x70] sm:$0xff]
      %v165 = vld [vmem:[%s142 + $0x78] sm:$0xff]
      %v166 = vld [vmem:[%s142 + $0x80] sm:$0xff]
      %v167 = vld [vmem:[%s142 + $0x88] sm:$0xff]
      %v168 = vld [vmem:[%s142 + $0x90] sm:$0xff]
      %v169 = vld [vmem:[%s142 + $0x98] sm:$0xff]
      %v170 = vld [vmem:[%s142 + $0xa0] sm:$0xff]
      %v171 = vld [vmem:[%s142 + $0xa8] sm:$0xff]
      %v172 = vld [vmem:[%s142 + $0xb0] sm:$0xff]
      %v173 = vld [vmem:[%s142 + $0xb8] sm:$0xff]
      %v174 = vld [vmem:[%s142 + $0xc0] sm:$0xff]
      %v175 = vld [vmem:[%s142 + $0xc8] sm:$0xff]
      %v176 = vld [vmem:[%s142 + $0xd0] sm:$0xff]
      %v177 = vld [vmem:[%s142 + $0xd8] sm:$0xff]
      %v178 = vld [vmem:[%s142 + $0xe0] sm:$0xff]
      %v179 = vld [vmem:[%s142 + $0xe8] sm:$0xff]
      %v180 = vld [vmem:[%s142 + $0xf0] sm:$0xff]
      %v181 = vld [vmem:[%s142 + $0xf8] sm:$0xff]
      %v182 = vld [vmem:[%s142 + $0x100] sm:$0xff]
      %v183 = vld [vmem:[%s142 + $0x108] sm:$0xff]
      %v184 = vld [vmem:[%s142 + $0x110] sm:$0xff]
      %v185 = vld [vmem:[%s142 + $0x118] sm:$0xff]
      %v186 = vld [vmem:[%s142 + $0x120] sm:$0xff]
      %v187 = vld [vmem:[%s142 + $0x128] sm:$0xff]
      %v188 = vld [vmem:[%s142 + $0x130] sm:$0xff]
      %v189 = vld [vmem:[%s142 + $0x138] sm:$0xff]
      %v190 = vld [vmem:[%s142 + $0x140] sm:$0xff]
      %v191 = vld [vmem:[%s142 + $0x148] sm:$0xff]
      %v192 = vld [vmem:[%s142 + $0x150] sm:$0xff]
      %v193 = vld [vmem:[%s142 + $0x158] sm:$0xff]
      %v194 = vld [vmem:[%s142 + $0x160] sm:$0xff]
      %v195 = vld [vmem:[%s142 + $0x168] sm:$0xff]
      %v196 = vld [vmem:[%s142 + $0x170] sm:$0xff]
      %v197 = vld [vmem:[%s142 + $0x178] sm:$0xff]
      %v198 = vld [vmem:[%s142 + $0x180] sm:$0xff]
      %v199 = vld [vmem:[%s142 + $0x188] sm:$0xff]
      %v200 = vld [vmem:[%s142 + $0x190] sm:$0xff]
      %v201 = vld [vmem:[%s142 + $0x198] sm:$0xff]
      %v202 = vld [vmem:[%s142 + $0x1a0] sm:$0xff]
      %v203 = vld [vmem:[%s142 + $0x1a8] sm:$0xff]
      %v204 = vld [vmem:[%s142 + $0x1b0] sm:$0xff]
      %v205 = vld [vmem:[%s142 + $0x1b8] sm:$0xff]
      %v206 = vld [vmem:[%s142 + $0x1c0] sm:$0xff]
      %v207 = vld [vmem:[%s142 + $0x1c8] sm:$0xff]
      %v208 = vld [vmem:[%s142 + $0x1d0] sm:$0xff]
      %v209 = vld [vmem:[%s142 + $0x1d8] sm:$0xff]
      %v210 = vld [vmem:[%s142 + $0x1e0] sm:$0xff]
      %v211 = vld [vmem:[%s142 + $0x1e8] sm:$0xff]
      %v212 = vld [vmem:[%s142 + $0x1f0] sm:$0xff]
      %v213 = vld [vmem:[%s142 + $0x1f8] sm:$0xff]
      %v214 = vld [vmem:[%s142 + $0x200] sm:$0xff]
      %v215 = vld [vmem:[%s142 + $0x208] sm:$0xff]
      %v216 = vld [vmem:[%s142 + $0x210] sm:$0xff]
      %v217 = vld [vmem:[%s142 + $0x218] sm:$0xff]
      %v218 = vld [vmem:[%s142 + $0x220] sm:$0xff]
      %v219 = vld [vmem:[%s142 + $0x228] sm:$0xff]
      %v220 = vld [vmem:[%s142 + $0x230] sm:$0xff]
      %v221 = vld [vmem:[%s142 + $0x238] sm:$0xff]
      %v222 = vld [vmem:[%s142 + $0x240] sm:$0xff]
      %v223 = vld [vmem:[%s142 + $0x248] sm:$0xff]
      %v224 = vld [vmem:[%s142 + $0x250] sm:$0xff]
      %v225 = vld [vmem:[%s142 + $0x258] sm:$0xff]
      %v226 = vld [vmem:[%s142 + $0x260] sm:$0xff]
      %v227 = vld [vmem:[%s142 + $0x268] sm:$0xff]
      %v228 = vld [vmem:[%s142 + $0x270] sm:$0xff]
      %v229 = vld [vmem:[%s142 + $0x278] sm:$0xff]
      %v230 = vld [vmem:[%s142 + $0x280] sm:$0xff]
      %v231 = vld [vmem:[%s142 + $0x288] sm:$0xff]
      %v232 = vld [vmem:[%s142 + $0x290] sm:$0xff]
      %v233 = vld [vmem:[%s142 + $0x298] sm:$0xff]
      %v234 = vld [vmem:[%s142 + $0x2a0] sm:$0xff]
      %v235 = vld [vmem:[%s142 + $0x2a8] sm:$0xff]
      %v236 = vld [vmem:[%s142 + $0x2b0] sm:$0xff]
      %v237 = vld [vmem:[%s142 + $0x2b8] sm:$0xff]
      %v238 = vld [vmem:[%s142 + $0x2c0] sm:$0xff]
      %v239 = vld [vmem:[%s142 + $0x2c8] sm:$0xff]
      %v240 = vld [vmem:[%s142 + $0x2d0] sm:$0xff]
      %v241 = vld [vmem:[%s142 + $0x2d8] sm:$0xff]
      %v242 = vld [vmem:[%s142 + $0x2e0] sm:$0xff]
      %v243 = vld [vmem:[%s142 + $0x2e8] sm:$0xff]
      %v244 = vld [vmem:[%s142 + $0x2f0] sm:$0xff]
      %v245 = vld [vmem:[%s142 + $0x2f8] sm:$0xff]
      %v246 = vld [vmem:[%s142 + $0x300] sm:$0xff]
      %v247 = vld [vmem:[%s142 + $0x308] sm:$0xff]
      %v248 = vld [vmem:[%s142 + $0x310] sm:$0xff]
      %v249 = vld [vmem:[%s142 + $0x318] sm:$0xff]
      %v250 = vld [vmem:[%s142 + $0x320] sm:$0xff]
      %v251 = vld [vmem:[%s142 + $0x328] sm:$0xff]
      %v252 = vld [vmem:[%s142 + $0x330] sm:$0xff]
      %v253 = vld [vmem:[%s142 + $0x338] sm:$0xff]
      %v254 = vld [vmem:[%s142 + $0x340] sm:$0xff]
      %v255 = vld [vmem:[%s142 + $0x348] sm:$0xff]
      %v256 = vld [vmem:[%s142 + $0x350] sm:$0xff]
      %v257 = vld [vmem:[%s142 + $0x358] sm:$0xff]
      %v258 = vld [vmem:[%s142 + $0x360] sm:$0xff]
      %v259 = vld [vmem:[%s142 + $0x368] sm:$0xff]
      %v260 = vld [vmem:[%s142 + $0x370] sm:$0xff]
      %v261 = vld [vmem:[%s142 + $0x378] sm:$0xff]
      %v262 = vld [vmem:[%s142 + $0x380] sm:$0xff]
      %v263 = vld [vmem:[%s142 + $0x388] sm:$0xff]
      %v264 = vld [vmem:[%s142 + $0x390] sm:$0xff]
      %v265 = vld [vmem:[%s142 + $0x398] sm:$0xff]
      %v266 = vld [vmem:[%s142 + $0x3a0] sm:$0xff]
      %v267 = vld [vmem:[%s142 + $0x3a8] sm:$0xff]
      %v268 = vld [vmem:[%s142 + $0x3b0] sm:$0xff]
      %v269 = vld [vmem:[%s142 + $0x3b8] sm:$0xff]
      %v270 = vld [vmem:[%s142 + $0x3c0] sm:$0xff]
      %v271 = vld [vmem:[%s142 + $0x3c8] sm:$0xff]
      %v272 = vld [vmem:[%s142 + $0x3d0] sm:$0xff]
      %v273 = vld [vmem:[%s142 + $0x3d8] sm:$0xff]
      %v274 = vld [vmem:[%s142 + $0x3e0] sm:$0xff]
      %v275 = vld [vmem:[%s142 + $0x3e8] sm:$0xff]
      %v276 = vld [vmem:[%s142 + $0x3f0] sm:$0xff]
      %v277 = vld [vmem:[%s142 + $0x3f8] sm:$0xff]
      %v278 = vld [vmem:[%s142 + $0x400] sm:$0xff]
      %v279 = vld [vmem:[%s142 + $0x408] sm:$0xff]
      %v280 = vld [vmem:[%s142 + $0x410] sm:$0xff]
      %v281 = vld [vmem:[%s142 + $0x418] sm:$0xff]
      %v282 = vld [vmem:[%s142 + $0x420] sm:$0xff]
      %v283 = vld [vmem:[%s142 + $0x428] sm:$0xff]
      %v284 = vld [vmem:[%s142 + $0x430] sm:$0xff]
      %v285 = vld [vmem:[%s142 + $0x438] sm:$0xff]
      %v286 = vld [vmem:[%s142 + $0x440] sm:$0xff]
      %v287 = vld [vmem:[%s142 + $0x448] sm:$0xff]
      %v288 = vld [vmem:[%s142 + $0x450] sm:$0xff]
      %v289 = vld [vmem:[%s142 + $0x458] sm:$0xff]
      %v290 = vld [vmem:[%s142 + $0x460] sm:$0xff]
      %v291 = vld [vmem:[%s142 + $0x468] sm:$0xff]
      %v292 = vld [vmem:[%s142 + $0x470] sm:$0xff]
      %v293 = vld [vmem:[%s142 + $0x478] sm:$0xff]
      %v294 = vld [vmem:[%s142 + $0x480] sm:$0xff]
      %v295 = vld [vmem:[%s142 + $0x488] sm:$0xff]
      %v296 = vld [vmem:[%s142 + $0x490] sm:$0xff]
      %v297 = vld [vmem:[%s142 + $0x498] sm:$0xff]
      %v298 = vld [vmem:[%s142 + $0x4a0] sm:$0xff]
      %v299 = vld [vmem:[%s142 + $0x4a8] sm:$0xff]
      %v300 = vld [vmem:[%s142 + $0x4b0] sm:$0xff]
      %v301 = vld [vmem:[%s142 + $0x4b8] sm:$0xff]
      %v302 = vld [vmem:[%s142 + $0x4c0] sm:$0xff]
      %v303 = vld [vmem:[%s142 + $0x4c8] sm:$0xff]
      %v304 = vld [vmem:[%s142 + $0x4d0] sm:$0xff]
      %v305 = vld [vmem:[%s142 + $0x4d8] sm:$0xff]
      %v306 = vld [vmem:[%s142 + $0x4e0] sm:$0xff]
      %v307 = vld [vmem:[%s142 + $0x4e8] sm:$0xff]
      %v308 = vld [vmem:[%s142 + $0x4f0] sm:$0xff]
      %v309 = vld [vmem:[%s142 + $0x4f8] sm:$0xff]
      %v310 = vld [vmem:[%s142 + $0x500] sm:$0xff]
      %v311 = vld [vmem:[%s142 + $0x508] sm:$0xff]
      %v312 = vld [vmem:[%s142 + $0x510] sm:$0xff]
      %v313 = vld [vmem:[%s142 + $0x518] sm:$0xff]
      %v314 = vld [vmem:[%s142 + $0x520] sm:$0xff]
      %v315 = vld [vmem:[%s142 + $0x528] sm:$0xff]
      %v316 = vld [vmem:[%s142 + $0x530] sm:$0xff]
      %v317 = vld [vmem:[%s142 + $0x538] sm:$0xff]
      %v318 = vld [vmem:[%s142 + $0x540] sm:$0xff]
      %v319 = vld [vmem:[%s142 + $0x548] sm:$0xff]
      %v320 = vld [vmem:[%s142 + $0x550] sm:$0xff]
      %v321 = vld [vmem:[%s142 + $0x558] sm:$0xff]
      %v322 = vld [vmem:[%s142 + $0x560] sm:$0xff]
      %v323 = vld [vmem:[%s142 + $0x568] sm:$0xff]
      %v324 = vld [vmem:[%s142 + $0x570] sm:$0xff]
      %v325 = vld [vmem:[%s142 + $0x578] sm:$0xff]
      %v326 = vld [vmem:[%s142 + $0x580] sm:$0xff]
      %v327 = vld [vmem:[%s142 + $0x588] sm:$0xff]
      %v328 = vld [vmem:[%s142 + $0x590] sm:$0xff]
      %v329 = vld [vmem:[%s142 + $0x598] sm:$0xff]
      %v330 = vld [vmem:[%s142 + $0x5a0] sm:$0xff]
      %v331 = vld [vmem:[%s142 + $0x5a8] sm:$0xff]
      %v332 = vld [vmem:[%s142 + $0x5b0] sm:$0xff]
      %v333 = vld [vmem:[%s142 + $0x5b8] sm:$0xff]
      %v334 = vld [vmem:[%s142 + $0x5c0] sm:$0xff]
      %v335 = vld [vmem:[%s142 + $0x5c8] sm:$0xff]
      %v336 = vld [vmem:[%s142 + $0x5d0] sm:$0xff]
      %v337 = vld [vmem:[%s142 + $0x5d8] sm:$0xff]
      %v338 = vld [vmem:[%s142 + $0x5e0] sm:$0xff]
      %v339 = vld [vmem:[%s142 + $0x5e8] sm:$0xff]
      %v340 = vld [vmem:[%s142 + $0x5f0] sm:$0xff]
      %v341 = vld [vmem:[%s142 + $0x5f8] sm:$0xff]
      %v342 = vld [vmem:[%s142 + $0x600] sm:$0xff]
      %v343 = vld [vmem:[%s142 + $0x608] sm:$0xff]
      %v344 = vld [vmem:[%s142 + $0x610] sm:$0xff]
      %v345 = vld [vmem:[%s142 + $0x618] sm:$0xff]
      %v346 = vld [vmem:[%s142 + $0x620] sm:$0xff]
      %v347 = vld [vmem:[%s142 + $0x628] sm:$0xff]
      %v348 = vld [vmem:[%s142 + $0x630] sm:$0xff]
      %v349 = vld [vmem:[%s142 + $0x638] sm:$0xff]
      %v350 = vld [vmem:[%s142 + $0x640] sm:$0xff]
      %v351 = vld [vmem:[%s142 + $0x648] sm:$0xff]
      %v352 = vld [vmem:[%s142 + $0x650] sm:$0xff]
      %v353 = vld [vmem:[%s142 + $0x658] sm:$0xff]
      %v354 = vld [vmem:[%s142 + $0x660] sm:$0xff]
      %v355 = vld [vmem:[%s142 + $0x668] sm:$0xff]
      %v356 = vld [vmem:[%s142 + $0x670] sm:$0xff]
      %v357 = vld [vmem:[%s142 + $0x678] sm:$0xff]
      %v358 = vld [vmem:[%s142 + $0x680] sm:$0xff]
      %v359 = vld [vmem:[%s142 + $0x688] sm:$0xff]
      %v360 = vld [vmem:[%s142 + $0x690] sm:$0xff]
      %v361 = vld [vmem:[%s142 + $0x698] sm:$0xff]
      %v362 = vld [vmem:[%s142 + $0x6a0] sm:$0xff]
      %v363 = vld [vmem:[%s142 + $0x6a8] sm:$0xff]
      %v364 = vld [vmem:[%s142 + $0x6b0] sm:$0xff]
      %v365 = vld [vmem:[%s142 + $0x6b8] sm:$0xff]
      %v366 = vld [vmem:[%s1] sm:$0xf]
      %v367 = vld [vmem:[%s1 + $0x4] sm:$0xf]
      %v368 = vld [vmem:[%s1 + $0x8] sm:$0xf]
      %v369 = vld [vmem:[%s1 + $0xc] sm:$0xf]
      %v370 = vld [vmem:[%s1 + $0x10] sm:$0xf]
      %v371 = vld [vmem:[%s1 + $0x14] sm:$0xf]
      %v372 = vld [vmem:[%s1 + $0x18] sm:$0xf]
      %v373 = vld [vmem:[%s1 + $0x1c] sm:$0xf]
      %v374 = vld [vmem:[%s1 + $0x20] sm:$0xf]
      %v375 = vld [vmem:[%s1 + $0x24] sm:$0xf]
      %v376 = vld [vmem:[%s1 + $0x28] sm:$0xf]
      %v377 = vld [vmem:[%s1 + $0x2c] sm:$0xf]
      %v378 = vld [vmem:[%s1 + $0x30] sm:$0xf]
      %v379 = vld [vmem:[%s1 + $0x34] sm:$0xf]
      %v380 = vld [vmem:[%s1 + $0x38] sm:$0xf]
      %v381 = vld [vmem:[%s1 + $0x3c] sm:$0xf]
      %v382 = vld [vmem:[%s1 + $0x40] sm:$0xf]
      %v383 = vld [vmem:[%s1 + $0x44] sm:$0xf]
      %v384 = vld [vmem:[%s1 + $0x48] sm:$0xf]
      %v385 = vld [vmem:[%s1 + $0x4c] sm:$0xf]
      %v386 = vld [vmem:[%s1 + $0x50] sm:$0xf]
      %v387 = vld [vmem:[%s1 + $0x54] sm:$0xf]
      %v388 = vld [vmem:[%s1 + $0x58] sm:$0xf]
      %v389 = vld [vmem:[%s1 + $0x5c] sm:$0xf]
      %v390 = vld [vmem:[%s1 + $0x60] sm:$0xf]
      %v391 = vld [vmem:[%s1 + $0x64] sm:$0xf]
      %v392 = vld [vmem:[%s1 + $0x68] sm:$0xf]
      %v393 = vld [vmem:[%s1 + $0x6c] sm:$0xf]
      %v394 = vld [vmem:[%s1 + $0x70] sm:$0xf]
      %v395 = vld [vmem:[%s1 + $0x74] sm:$0xf]
      %v396 = vld [vmem:[%s1 + $0x78] sm:$0xf]
      %v397 = vld [vmem:[%s1 + $0x7c] sm:$0xf]
      %v398 = vld [vmem:[%s1 + $0x80] sm:$0xf]
      %v399 = vld [vmem:[%s1 + $0x84] sm:$0xf]
      %v400 = vld [vmem:[%s1 + $0x88] sm:$0xf]
      %v401 = vld [vmem:[%s1 + $0x8c] sm:$0xf]
      %v402 = vld [vmem:[%s1 + $0x90] sm:$0xf]
      %v403 = vld [vmem:[%s1 + $0x94] sm:$0xf]
      %v404 = vld [vmem:[%s1 + $0x98] sm:$0xf]
      %v405 = vld [vmem:[%s1 + $0x9c] sm:$0xf]
      %v406 = vld [vmem:[%s1 + $0xa0] sm:$0xf]
      %v407 = vld [vmem:[%s1 + $0xa4] sm:$0xf]
      %v408 = vld [vmem:[%s1 + $0xa8] sm:$0xf]
      %v409 = vld [vmem:[%s1 + $0xac] sm:$0xf]
      %v410 = vld [vmem:[%s1 + $0xb0] sm:$0xf]
      %v411 = vld [vmem:[%s1 + $0xb4] sm:$0xf]
      %v412 = vld [vmem:[%s1 + $0xb8] sm:$0xf]
      %v413 = vld [vmem:[%s1 + $0xbc] sm:$0xf]
      %v414 = vld [vmem:[%s1 + $0xc0] sm:$0xf]
      %v415 = vld [vmem:[%s1 + $0xc4] sm:$0xf]
      %v416 = vld [vmem:[%s1 + $0xc8] sm:$0xf]
      %v417 = vld [vmem:[%s1 + $0xcc] sm:$0xf]
      %v418 = vld [vmem:[%s1 + $0xd0] sm:$0xf]
      %v419 = vld [vmem:[%s1 + $0xd4] sm:$0xf]
      %v420 = vld [vmem:[%s1 + $0xd8] sm:$0xf]
      %v421 = vld [vmem:[%s1 + $0xdc] sm:$0xf]
      %v422 = vld [vmem:[%s1 + $0xe0] sm:$0xf]
      %v423 = vld [vmem:[%s1 + $0xe4] sm:$0xf]
      %v424 = vld [vmem:[%s1 + $0xe8] sm:$0xf]
      %v425 = vld [vmem:[%s1 + $0xec] sm:$0xf]
      %v426 = vld [vmem:[%s1 + $0xf0] sm:$0xf]
      %v427 = vld [vmem:[%s1 + $0xf4] sm:$0xf]
      %v428 = vld [vmem:[%s1 + $0xf8] sm:$0xf]
      %v429 = vld [vmem:[%s1 + $0xfc] sm:$0xf]
      %v430 = vld [vmem:[%s1 + $0x100] sm:$0xf]
      %v431 = vld [vmem:[%s1 + $0x104] sm:$0xf]
      %v432 = vld [vmem:[%s1 + $0x108] sm:$0xf]
      %v433 = vld [vmem:[%s1 + $0x10c] sm:$0xf]
      %v434 = vld [vmem:[%s1 + $0x110] sm:$0xf]
      %v435 = vld [vmem:[%s1 + $0x114] sm:$0xf]
      %v436 = vld [vmem:[%s1 + $0x118] sm:$0xf]
      %v437 = vld [vmem:[%s1 + $0x11c] sm:$0xf]
      %v438 = vld [vmem:[%s1 + $0x120] sm:$0xf]
      %v439 = vld [vmem:[%s1 + $0x124] sm:$0xf]
      %v440 = vld [vmem:[%s1 + $0x128] sm:$0xf]
      %v441 = vld [vmem:[%s1 + $0x12c] sm:$0xf]
      %v442 = vld [vmem:[%s1 + $0x130] sm:$0xf]
      %v443 = vld [vmem:[%s1 + $0x134] sm:$0xf]
      %v444 = vld [vmem:[%s1 + $0x138] sm:$0xf]
      %v445 = vld [vmem:[%s1 + $0x13c] sm:$0xf]
      %v446 = vld [vmem:[%s1 + $0x140] sm:$0xf]
      %v447 = vld [vmem:[%s1 + $0x144] sm:$0xf]
      %v448 = vld [vmem:[%s1 + $0x148] sm:$0xf]
      %v449 = vld [vmem:[%s1 + $0x14c] sm:$0xf]
      %v450 = vld [vmem:[%s1 + $0x150] sm:$0xf]
      %v451 = vld [vmem:[%s1 + $0x154] sm:$0xf]
      %v452 = vld [vmem:[%s1 + $0x158] sm:$0xf]
      %v453 = vld [vmem:[%s1 + $0x15c] sm:$0xf]
      %v454 = vld [vmem:[%s1 + $0x160] sm:$0xf]
      %v455 = vld [vmem:[%s1 + $0x164] sm:$0xf]
      %v456 = vld [vmem:[%s1 + $0x168] sm:$0xf]
      %v457 = vld [vmem:[%s1 + $0x16c] sm:$0xf]
      %v458 = vld [vmem:[%s1 + $0x170] sm:$0xf]
      %v459 = vld [vmem:[%s1 + $0x174] sm:$0xf]
      %v460 = vld [vmem:[%s1 + $0x178] sm:$0xf]
      %v461 = vld [vmem:[%s1 + $0x17c] sm:$0xf]
      %v462 = vld [vmem:[%s1 + $0x180] sm:$0xf]
      %v463 = vld [vmem:[%s1 + $0x184] sm:$0xf]
      %v464 = vld [vmem:[%s1 + $0x188] sm:$0xf]
      %v465 = vld [vmem:[%s1 + $0x18c] sm:$0xf]
      %v466 = vld [vmem:[%s1 + $0x190] sm:$0xf]
      %v467 = vld [vmem:[%s1 + $0x194] sm:$0xf]
      %v468 = vld [vmem:[%s1 + $0x198] sm:$0xf]
      %v469 = vld [vmem:[%s1 + $0x19c] sm:$0xf]
      %v470 = vld [vmem:[%s1 + $0x1a0] sm:$0xf]
      %v471 = vld [vmem:[%s1 + $0x1a4] sm:$0xf]
      %v472 = vld [vmem:[%s1 + $0x1a8] sm:$0xf]
      %v473 = vld [vmem:[%s1 + $0x1ac] sm:$0xf]
      %v474 = vld [vmem:[%s1 + $0x1b0] sm:$0xf]
      %v475 = vld [vmem:[%s1 + $0x1b4] sm:$0xf]
      %v476 = vld [vmem:[%s1 + $0x1b8] sm:$0xf]
      %v477 = vld [vmem:[%s1 + $0x1bc] sm:$0xf]
      %v478 = vld [vmem:[%s1 + $0x1c0] sm:$0xf]
      %v479 = vld [vmem:[%s1 + $0x1c4] sm:$0xf]
      %v480 = vld [vmem:[%s1 + $0x1c8] sm:$0xf]
      %v481 = vld [vmem:[%s1 + $0x1cc] sm:$0xf]
      %v482 = vld [vmem:[%s1 + $0x1d0] sm:$0xf]
      %v483 = vld [vmem:[%s1 + $0x1d4] sm:$0xf]
      %v484 = vld [vmem:[%s1 + $0x1d8] sm:$0xf]
      %v485 = vld [vmem:[%s1 + $0x1dc] sm:$0xf]
      %v486 = vld [vmem:[%s1 + $0x1e0] sm:$0xf]
      %v487 = vld [vmem:[%s1 + $0x1e4] sm:$0xf]
      %v488 = vld [vmem:[%s1 + $0x1e8] sm:$0xf]
      %v489 = vld [vmem:[%s1 + $0x1ec] sm:$0xf]
      %v490 = vld [vmem:[%s1 + $0x1f0] sm:$0xf]
      %v491 = vld [vmem:[%s1 + $0x1f4] sm:$0xf]
      %v492 = vld [vmem:[%s1 + $0x1f8] sm:$0xf]
      %v493 = vld [vmem:[%s1 + $0x1fc] sm:$0xf]
      %v494 = vld [vmem:[%s1 + $0x200] sm:$0xf]
      %v495 = vld [vmem:[%s1 + $0x204] sm:$0xf]
      %v496 = vld [vmem:[%s1 + $0x208] sm:$0xf]
      %v497 = vld [vmem:[%s1 + $0x20c] sm:$0xf]
      %v498 = vld [vmem:[%s1 + $0x210] sm:$0xf]
      %v499 = vld [vmem:[%s1 + $0x214] sm:$0xf]
      %v500 = vld [vmem:[%s1 + $0x218] sm:$0xf]
      %v501 = vld [vmem:[%s1 + $0x21c] sm:$0xf]
      %v502 = vld [vmem:[%s1 + $0x220] sm:$0xf]
      %v503 = vld [vmem:[%s1 + $0x224] sm:$0xf]
      %v504 = vld [vmem:[%s1 + $0x228] sm:$0xf]
      %v505 = vld [vmem:[%s1 + $0x22c] sm:$0xf]
      %v506 = vld [vmem:[%s1 + $0x230] sm:$0xf]
      %v507 = vld [vmem:[%s1 + $0x234] sm:$0xf]
      %v508 = vld [vmem:[%s1 + $0x238] sm:$0xf]
      %v509 = vld [vmem:[%s1 + $0x23c] sm:$0xf]
      %v510 = vld [vmem:[%s1 + $0x240] sm:$0xf]
      %v511 = vld [vmem:[%s1 + $0x244] sm:$0xf]
      %v512 = vld [vmem:[%s1 + $0x248] sm:$0xf]
      %v513 = vld [vmem:[%s1 + $0x24c] sm:$0xf]
      %v514 = vld [vmem:[%s1 + $0x250] sm:$0xf]
      %v515 = vld [vmem:[%s1 + $0x254] sm:$0xf]
      %v516 = vld [vmem:[%s1 + $0x258] sm:$0xf]
      %v517 = vld [vmem:[%s1 + $0x25c] sm:$0xf]
      %v518 = vld [vmem:[%s1 + $0x260] sm:$0xf]
      %v519 = vld [vmem:[%s1 + $0x264] sm:$0xf]
      %v520 = vld [vmem:[%s1 + $0x268] sm:$0xf]
      %v521 = vld [vmem:[%s1 + $0x26c] sm:$0xf]
      %v522 = vld [vmem:[%s1 + $0x270] sm:$0xf]
      %v523 = vld [vmem:[%s1 + $0x274] sm:$0xf]
      %v524 = vld [vmem:[%s1 + $0x278] sm:$0xf]
      %v525 = vld [vmem:[%s1 + $0x27c] sm:$0xf]
      %v526 = vld [vmem:[%s1 + $0x280] sm:$0xf]
      %v527 = vld [vmem:[%s1 + $0x284] sm:$0xf]
      %v528 = vld [vmem:[%s1 + $0x288] sm:$0xf]
      %v529 = vld [vmem:[%s1 + $0x28c] sm:$0xf]
      %v530 = vld [vmem:[%s1 + $0x290] sm:$0xf]
      %v531 = vld [vmem:[%s1 + $0x294] sm:$0xf]
      %v532 = vld [vmem:[%s1 + $0x298] sm:$0xf]
      %v533 = vld [vmem:[%s1 + $0x29c] sm:$0xf]
      %v534 = vld [vmem:[%s1 + $0x2a0] sm:$0xf]
      %v535 = vld [vmem:[%s1 + $0x2a4] sm:$0xf]
      %v536 = vld [vmem:[%s1 + $0x2a8] sm:$0xf]
      %v537 = vld [vmem:[%s1 + $0x2ac] sm:$0xf]
      %v538 = vld [vmem:[%s1 + $0x2b0] sm:$0xf]
      %v539 = vld [vmem:[%s1 + $0x2b4] sm:$0xf]
      %v540 = vld [vmem:[%s1 + $0x2b8] sm:$0xf]
      %v541 = vld [vmem:[%s1 + $0x2bc] sm:$0xf]
      %v542 = vld [vmem:[%s1 + $0x2c0] sm:$0xf]
      %v543 = vld [vmem:[%s1 + $0x2c4] sm:$0xf]
      %v544 = vld [vmem:[%s1 + $0x2c8] sm:$0xf]
      %v545 = vld [vmem:[%s1 + $0x2cc] sm:$0xf]
      %v546 = vld [vmem:[%s1 + $0x2d0] sm:$0xf]
      %v547 = vld [vmem:[%s1 + $0x2d4] sm:$0xf]
      %v548 = vld [vmem:[%s1 + $0x2d8] sm:$0xf]
      %v549 = vld [vmem:[%s1 + $0x2dc] sm:$0xf]
      %v550 = vld [vmem:[%s1 + $0x2e0] sm:$0xf]
      %v551 = vld [vmem:[%s1 + $0x2e4] sm:$0xf]
      %v552 = vld [vmem:[%s1 + $0x2e8] sm:$0xf]
      %v553 = vld [vmem:[%s1 + $0x2ec] sm:$0xf]
      %v554 = vld [vmem:[%s1 + $0x2f0] sm:$0xf]
      %v555 = vld [vmem:[%s1 + $0x2f4] sm:$0xf]
      %v556 = vld [vmem:[%s1 + $0x2f8] sm:$0xf]
      %v557 = vld [vmem:[%s1 + $0x2fc] sm:$0xf]
      %v558 = vld [vmem:[%s1 + $0x300] sm:$0xf]
      %v559 = vld [vmem:[%s1 + $0x304] sm:$0xf]
      %v560 = vld [vmem:[%s1 + $0x308] sm:$0xf]
      %v561 = vld [vmem:[%s1 + $0x30c] sm:$0xf]
      %v562 = vld [vmem:[%s1 + $0x310] sm:$0xf]
      %v563 = vld [vmem:[%s1 + $0x314] sm:$0xf]
      %v564 = vld [vmem:[%s1 + $0x318] sm:$0xf]
      %v565 = vld [vmem:[%s1 + $0x31c] sm:$0xf]
      %v566 = vld [vmem:[%s1 + $0x320] sm:$0xf]
      %v567 = vld [vmem:[%s1 + $0x324] sm:$0xf]
      %v568 = vld [vmem:[%s1 + $0x328] sm:$0xf]
      %v569 = vld [vmem:[%s1 + $0x32c] sm:$0xf]
      %v570 = vld [vmem:[%s1 + $0x330] sm:$0xf]
      %v571 = vld [vmem:[%s1 + $0x334] sm:$0xf]
      %v572 = vld [vmem:[%s1 + $0x338] sm:$0xf]
      %v573 = vld [vmem:[%s1 + $0x33c] sm:$0xf]
      %v574 = vld [vmem:[%s1 + $0x340] sm:$0xf]
      %v575 = vld [vmem:[%s1 + $0x344] sm:$0xf]
      %v576 = vld [vmem:[%s1 + $0x348] sm:$0xf]
      %v577 = vld [vmem:[%s1 + $0x34c] sm:$0xf]
      %v578 = vld [vmem:[%s1 + $0x350] sm:$0xf]
      %v579 = vld [vmem:[%s1 + $0x354] sm:$0xf]
      %v580 = vld [vmem:[%s1 + $0x358] sm:$0xf]
      %v581 = vld [vmem:[%s1 + $0x35c] sm:$0xf]
      %v582 = vld [vmem:[%s1 + $0x360] sm:$0xf]
      %v583 = vld [vmem:[%s1 + $0x364] sm:$0xf]
      %v584 = vld [vmem:[%s1 + $0x368] sm:$0xf]
      %v585 = vld [vmem:[%s1 + $0x36c] sm:$0xf]
      %v586 = vld [vmem:[%s1 + $0x370] sm:$0xf]
      %v587 = vld [vmem:[%s1 + $0x374] sm:$0xf]
      %v588 = vld [vmem:[%s1 + $0x378] sm:$0xf]
      %v589 = vld [vmem:[%s1 + $0x37c] sm:$0xf]
      %v590 = vld [vmem:[%s1 + $0x380] sm:$0xf]
      %v591 = vld [vmem:[%s1 + $0x384] sm:$0xf]
      %v592 = vld [vmem:[%s1 + $0x388] sm:$0xf]
      %v593 = vld [vmem:[%s1 + $0x38c] sm:$0xf]
      %v594 = vld [vmem:[%s1 + $0x390] sm:$0xf]
      %v595 = vld [vmem:[%s1 + $0x394] sm:$0xf]
      %v596 = vld [vmem:[%s1 + $0x398] sm:$0xf]
      %v597 = vld [vmem:[%s1 + $0x39c] sm:$0xf]
      %v598 = vld [vmem:[%s1 + $0x3a0] sm:$0xf]
      %v599 = vld [vmem:[%s1 + $0x3a4] sm:$0xf]
      %v600 = vld [vmem:[%s1 + $0x3a8] sm:$0xf]
      %v601 = vld [vmem:[%s1 + $0x3ac] sm:$0xf]
      %v602 = vld [vmem:[%s1 + $0x3b0] sm:$0xf]
      %v603 = vld [vmem:[%s1 + $0x3b4] sm:$0xf]
      %v604 = vld [vmem:[%s1 + $0x3b8] sm:$0xf]
      %v605 = vld [vmem:[%s1 + $0x3bc] sm:$0xf]
      %v606 = vld [vmem:[%s1 + $0x3c0] sm:$0xf]
      %v607 = vld [vmem:[%s1 + $0x3c4] sm:$0xf]
      %v608 = vld [vmem:[%s1 + $0x3c8] sm:$0xf]
      %v609 = vld [vmem:[%s1 + $0x3cc] sm:$0xf]
      %v610 = vld [vmem:[%s1 + $0x3d0] sm:$0xf]
      %v611 = vld [vmem:[%s1 + $0x3d4] sm:$0xf]
      %v612 = vld [vmem:[%s1 + $0x3d8] sm:$0xf]
      %v613 = vld [vmem:[%s1 + $0x3dc] sm:$0xf]
      %v614 = vld [vmem:[%s1 + $0x3e0] sm:$0xf]
      %v615 = vld [vmem:[%s1 + $0x3e4] sm:$0xf]
      %v616 = vld [vmem:[%s1 + $0x3e8] sm:$0xf]
      %v617 = vld [vmem:[%s1 + $0x3ec] sm:$0xf]
      %v618 = vld [vmem:[%s1 + $0x3f0] sm:$0xf]
      %v619 = vld [vmem:[%s1 + $0x3f4] sm:$0xf]
      %v620 = vld [vmem:[%s1 + $0x3f8] sm:$0xf]
      %v621 = vld [vmem:[%s1 + $0x3fc] sm:$0xf]
      %v622 = vld [vmem:[%s1 + $0x400] sm:$0xf]
      %v623 = vld [vmem:[%s1 + $0x404] sm:$0xf]
      %v624 = vld [vmem:[%s1 + $0x408] sm:$0xf]
      %v625 = vld [vmem:[%s1 + $0x40c] sm:$0xf]
      %v626 = vld [vmem:[%s1 + $0x410] sm:$0xf]
      %v627 = vld [vmem:[%s1 + $0x414] sm:$0xf]
      %v628 = vld [vmem:[%s1 + $0x418] sm:$0xf]
      %v629 = vld [vmem:[%s1 + $0x41c] sm:$0xf]
      %v630 = vld [vmem:[%s1 + $0x420] sm:$0xf]
      %v631 = vld [vmem:[%s1 + $0x424] sm:$0xf]
      %v632 = vld [vmem:[%s1 + $0x428] sm:$0xf]
      %v633 = vld [vmem:[%s1 + $0x42c] sm:$0xf]
      %v634 = vld [vmem:[%s1 + $0x430] sm:$0xf]
      %v635 = vld [vmem:[%s1 + $0x434] sm:$0xf]
      %v636 = vld [vmem:[%s1 + $0x438] sm:$0xf]
      %v637 = vld [vmem:[%s1 + $0x43c] sm:$0xf]
      %v638 = vld [vmem:[%s1 + $0x440] sm:$0xf]
      %v639 = vld [vmem:[%s1 + $0x444] sm:$0xf]
      %v640 = vld [vmem:[%s1 + $0x448] sm:$0xf]
      %v641 = vld [vmem:[%s1 + $0x44c] sm:$0xf]
      %v642 = vld [vmem:[%s1 + $0x450] sm:$0xf]
      %v643 = vld [vmem:[%s1 + $0x454] sm:$0xf]
      %v644 = vld [vmem:[%s1 + $0x458] sm:$0xf]
      %v645 = vld [vmem:[%s1 + $0x45c] sm:$0xf]
      %v646 = vld [vmem:[%s1 + $0x460] sm:$0xf]
      %v647 = vld [vmem:[%s1 + $0x464] sm:$0xf]
      %v648 = vld [vmem:[%s1 + $0x468] sm:$0xf]
      %v649 = vld [vmem:[%s1 + $0x46c] sm:$0xf]
      %v650 = vld [vmem:[%s1 + $0x470] sm:$0xf]
      %v651 = vld [vmem:[%s1 + $0x474] sm:$0xf]
      %v652 = vld [vmem:[%s1 + $0x478] sm:$0xf]
      %v653 = vld [vmem:[%s1 + $0x47c] sm:$0xf]
      %v870 = vunpack.c.l.b16 %v150
      %v871 = vunpack.c.h.b16 %v150
      %v872 = vunpack.c.l.b16 %v151
      %v873 = vunpack.c.h.b16 %v151
      %v874 = vunpack.c.l.b16 %v152
      %v875 = vunpack.c.h.b16 %v152
      %v876 = vunpack.c.l.b16 %v153
      %v877 = vunpack.c.h.b16 %v153
      %v878 = vunpack.c.l.b16 %v154
      %v879 = vunpack.c.h.b16 %v154
      %v880 = vunpack.c.l.b16 %v155
      %v881 = vunpack.c.h.b16 %v155
      %v882 = vunpack.c.l.b16 %v156
      %v883 = vunpack.c.h.b16 %v156
      %v884 = vunpack.c.l.b16 %v157
      %v885 = vunpack.c.h.b16 %v157
      %v886 = vunpack.c.l.b16 %v158
      %v887 = vunpack.c.h.b16 %v158
      %v888 = vunpack.c.l.b16 %v159
      %v889 = vunpack.c.h.b16 %v159
      %v890 = vunpack.c.l.b16 %v160
      %v891 = vunpack.c.h.b16 %v160
      %v892 = vunpack.c.l.b16 %v161
      %v893 = vunpack.c.h.b16 %v161
      %v894 = vunpack.c.l.b16 %v162
      %v895 = vunpack.c.h.b16 %v162
      %v896 = vunpack.c.l.b16 %v163
      %v897 = vunpack.c.h.b16 %v163
      %v898 = vunpack.c.l.b16 %v164
      %v899 = vunpack.c.h.b16 %v164
      %v900 = vunpack.c.l.b16 %v165
      %v901 = vunpack.c.h.b16 %v165
      %v902 = vunpack.c.l.b16 %v166
      %v903 = vunpack.c.h.b16 %v166
      %v904 = vunpack.c.l.b16 %v167
      %v905 = vunpack.c.h.b16 %v167
      %v906 = vunpack.c.l.b16 %v168
      %v907 = vunpack.c.h.b16 %v168
      %v908 = vunpack.c.l.b16 %v169
      %v909 = vunpack.c.h.b16 %v169
      %v910 = vunpack.c.l.b16 %v170
      %v911 = vunpack.c.h.b16 %v170
      %v912 = vunpack.c.l.b16 %v171
      %v913 = vunpack.c.h.b16 %v171
      %v914 = vunpack.c.l.b16 %v172
      %v915 = vunpack.c.h.b16 %v172
      %v916 = vunpack.c.l.b16 %v173
      %v917 = vunpack.c.h.b16 %v173
      %v918 = vunpack.c.l.b16 %v174
      %v919 = vunpack.c.h.b16 %v174
      %v920 = vunpack.c.l.b16 %v175
      %v921 = vunpack.c.h.b16 %v175
      %v922 = vunpack.c.l.b16 %v176
      %v923 = vunpack.c.h.b16 %v176
      %v924 = vunpack.c.l.b16 %v177
      %v925 = vunpack.c.h.b16 %v177
      %v926 = vunpack.c.l.b16 %v178
      %v927 = vunpack.c.h.b16 %v178
      %v928 = vunpack.c.l.b16 %v179
      %v929 = vunpack.c.h.b16 %v179
      %v930 = vunpack.c.l.b16 %v180
      %v931 = vunpack.c.h.b16 %v180
      %v932 = vunpack.c.l.b16 %v181
      %v933 = vunpack.c.h.b16 %v181
      %v934 = vunpack.c.l.b16 %v182
      %v935 = vunpack.c.h.b16 %v182
      %v936 = vunpack.c.l.b16 %v183
      %v937 = vunpack.c.h.b16 %v183
      %v938 = vunpack.c.l.b16 %v184
      %v939 = vunpack.c.h.b16 %v184
      %v940 = vunpack.c.l.b16 %v185
      %v941 = vunpack.c.h.b16 %v185
      %v942 = vunpack.c.l.b16 %v186
      %v943 = vunpack.c.h.b16 %v186
      %v944 = vunpack.c.l.b16 %v187
      %v945 = vunpack.c.h.b16 %v187
      %v946 = vunpack.c.l.b16 %v188
      %v947 = vunpack.c.h.b16 %v188
      %v948 = vunpack.c.l.b16 %v189
      %v949 = vunpack.c.h.b16 %v189
      %v950 = vunpack.c.l.b16 %v190
      %v951 = vunpack.c.h.b16 %v190
      %v952 = vunpack.c.l.b16 %v191
      %v953 = vunpack.c.h.b16 %v191
      %v954 = vunpack.c.l.b16 %v192
      %v955 = vunpack.c.h.b16 %v192
      %v956 = vunpack.c.l.b16 %v193
      %v957 = vunpack.c.h.b16 %v193
      %v958 = vunpack.c.l.b16 %v194
      %v959 = vunpack.c.h.b16 %v194
      %v960 = vunpack.c.l.b16 %v195
      %v961 = vunpack.c.h.b16 %v195
      %v962 = vunpack.c.l.b16 %v196
      %v963 = vunpack.c.h.b16 %v196
      %v964 = vunpack.c.l.b16 %v197
      %v965 = vunpack.c.h.b16 %v197
      %v966 = vunpack.c.l.b16 %v198
      %v967 = vunpack.c.h.b16 %v198
      %v968 = vunpack.c.l.b16 %v199
      %v969 = vunpack.c.h.b16 %v199
      %v970 = vunpack.c.l.b16 %v200
      %v971 = vunpack.c.h.b16 %v200
      %v972 = vunpack.c.l.b16 %v201
      %v973 = vunpack.c.h.b16 %v201
      %v974 = vunpack.c.l.b16 %v202
      %v975 = vunpack.c.h.b16 %v202
      %v976 = vunpack.c.l.b16 %v203
      %v977 = vunpack.c.h.b16 %v203
      %v978 = vunpack.c.l.b16 %v204
      %v979 = vunpack.c.h.b16 %v204
      %v980 = vunpack.c.l.b16 %v205
      %v981 = vunpack.c.h.b16 %v205
      %v982 = vunpack.c.l.b16 %v206
      %v983 = vunpack.c.h.b16 %v206
      %v984 = vunpack.c.l.b16 %v207
      %v985 = vunpack.c.h.b16 %v207
      %v986 = vunpack.c.l.b16 %v208
      %v987 = vunpack.c.h.b16 %v208
      %v988 = vunpack.c.l.b16 %v209
      %v989 = vunpack.c.h.b16 %v209
      %v990 = vunpack.c.l.b16 %v210
      %v991 = vunpack.c.h.b16 %v210
      %v992 = vunpack.c.l.b16 %v211
      %v993 = vunpack.c.h.b16 %v211
      %v994 = vunpack.c.l.b16 %v212
      %v995 = vunpack.c.h.b16 %v212
      %v996 = vunpack.c.l.b16 %v213
      %v997 = vunpack.c.h.b16 %v213
      %v998 = vunpack.c.l.b16 %v214
      %v999 = vunpack.c.h.b16 %v214
      %v1000 = vunpack.c.l.b16 %v215
      %v1001 = vunpack.c.h.b16 %v215
      %v1002 = vunpack.c.l.b16 %v216
      %v1003 = vunpack.c.h.b16 %v216
      %v1004 = vunpack.c.l.b16 %v217
      %v1005 = vunpack.c.h.b16 %v217
      %v1006 = vunpack.c.l.b16 %v218
      %v1007 = vunpack.c.h.b16 %v218
      %v1008 = vunpack.c.l.b16 %v219
      %v1009 = vunpack.c.h.b16 %v219
      %v1010 = vunpack.c.l.b16 %v220
      %v1011 = vunpack.c.h.b16 %v220
      %v1012 = vunpack.c.l.b16 %v221
      %v1013 = vunpack.c.h.b16 %v221
      %v1014 = vunpack.c.l.b16 %v222
      %v1015 = vunpack.c.h.b16 %v222
      %v1016 = vunpack.c.l.b16 %v223
      %v1017 = vunpack.c.h.b16 %v223
      %v1018 = vunpack.c.l.b16 %v224
      %v1019 = vunpack.c.h.b16 %v224
      %v1020 = vunpack.c.l.b16 %v225
      %v1021 = vunpack.c.h.b16 %v225
      %v1022 = vunpack.c.l.b16 %v226
      %v1023 = vunpack.c.h.b16 %v226
      %v1024 = vunpack.c.l.b16 %v227
      %v1025 = vunpack.c.h.b16 %v227
      %v1026 = vunpack.c.l.b16 %v228
      %v1027 = vunpack.c.h.b16 %v228
      %v1028 = vunpack.c.l.b16 %v229
      %v1029 = vunpack.c.h.b16 %v229
      %v1030 = vunpack.c.l.b16 %v230
      %v1031 = vunpack.c.h.b16 %v230
      %v1032 = vunpack.c.l.b16 %v231
      %v1033 = vunpack.c.h.b16 %v231
      %v1034 = vunpack.c.l.b16 %v232
      %v1035 = vunpack.c.h.b16 %v232
      %v1036 = vunpack.c.l.b16 %v233
      %v1037 = vunpack.c.h.b16 %v233
      %v1038 = vunpack.c.l.b16 %v234
      %v1039 = vunpack.c.h.b16 %v234
      %v1040 = vunpack.c.l.b16 %v235
      %v1041 = vunpack.c.h.b16 %v235
      %v1042 = vunpack.c.l.b16 %v236
      %v1043 = vunpack.c.h.b16 %v236
      %v1044 = vunpack.c.l.b16 %v237
      %v1045 = vunpack.c.h.b16 %v237
      %v1046 = vunpack.c.l.b16 %v238
      %v1047 = vunpack.c.h.b16 %v238
      %v1048 = vunpack.c.l.b16 %v239
      %v1049 = vunpack.c.h.b16 %v239
      %v1050 = vunpack.c.l.b16 %v240
      %v1051 = vunpack.c.h.b16 %v240
      %v1052 = vunpack.c.l.b16 %v241
      %v1053 = vunpack.c.h.b16 %v241
      %v1054 = vunpack.c.l.b16 %v242
      %v1055 = vunpack.c.h.b16 %v242
      %v1056 = vunpack.c.l.b16 %v243
      %v1057 = vunpack.c.h.b16 %v243
      %v1058 = vunpack.c.l.b16 %v244
      %v1059 = vunpack.c.h.b16 %v244
      %v1060 = vunpack.c.l.b16 %v245
      %v1061 = vunpack.c.h.b16 %v245
      %v1062 = vunpack.c.l.b16 %v246
      %v1063 = vunpack.c.h.b16 %v246
      %v1064 = vunpack.c.l.b16 %v247
      %v1065 = vunpack.c.h.b16 %v247
      %v1066 = vunpack.c.l.b16 %v248
      %v1067 = vunpack.c.h.b16 %v248
      %v1068 = vunpack.c.l.b16 %v249
      %v1069 = vunpack.c.h.b16 %v249
      %v1070 = vunpack.c.l.b16 %v250
      %v1071 = vunpack.c.h.b16 %v250
      %v1072 = vunpack.c.l.b16 %v251
      %v1073 = vunpack.c.h.b16 %v251
      %v1074 = vunpack.c.l.b16 %v252
      %v1075 = vunpack.c.h.b16 %v252
      %v1076 = vunpack.c.l.b16 %v253
      %v1077 = vunpack.c.h.b16 %v253
      %v1078 = vunpack.c.l.b16 %v254
      %v1079 = vunpack.c.h.b16 %v254
      %v1080 = vunpack.c.l.b16 %v255
      %v1081 = vunpack.c.h.b16 %v255
      %v1082 = vunpack.c.l.b16 %v256
      %v1083 = vunpack.c.h.b16 %v256
      %v1084 = vunpack.c.l.b16 %v257
      %v1085 = vunpack.c.h.b16 %v257
      %v1086 = vunpack.c.l.b16 %v258
      %v1087 = vunpack.c.h.b16 %v258
      %v1088 = vunpack.c.l.b16 %v259
      %v1089 = vunpack.c.h.b16 %v259
      %v1090 = vunpack.c.l.b16 %v260
      %v1091 = vunpack.c.h.b16 %v260
      %v1092 = vunpack.c.l.b16 %v261
      %v1093 = vunpack.c.h.b16 %v261
      %v1094 = vunpack.c.l.b16 %v262
      %v1095 = vunpack.c.h.b16 %v262
      %v1096 = vunpack.c.l.b16 %v263
      %v1097 = vunpack.c.h.b16 %v263
      %v1098 = vunpack.c.l.b16 %v264
      %v1099 = vunpack.c.h.b16 %v264
      %v1100 = vunpack.c.l.b16 %v265
      %v1101 = vunpack.c.h.b16 %v265
      %v1102 = vunpack.c.l.b16 %v266
      %v1103 = vunpack.c.h.b16 %v266
      %v1104 = vunpack.c.l.b16 %v267
      %v1105 = vunpack.c.h.b16 %v267
      %v1106 = vunpack.c.l.b16 %v268
      %v1107 = vunpack.c.h.b16 %v268
      %v1108 = vunpack.c.l.b16 %v269
      %v1109 = vunpack.c.h.b16 %v269
      %v1110 = vunpack.c.l.b16 %v270
      %v1111 = vunpack.c.h.b16 %v270
      %v1112 = vunpack.c.l.b16 %v271
      %v1113 = vunpack.c.h.b16 %v271
      %v1114 = vunpack.c.l.b16 %v272
      %v1115 = vunpack.c.h.b16 %v272
      %v1116 = vunpack.c.l.b16 %v273
      %v1117 = vunpack.c.h.b16 %v273
      %v1118 = vunpack.c.l.b16 %v274
      %v1119 = vunpack.c.h.b16 %v274
      %v1120 = vunpack.c.l.b16 %v275
      %v1121 = vunpack.c.h.b16 %v275
      %v1122 = vunpack.c.l.b16 %v276
      %v1123 = vunpack.c.h.b16 %v276
      %v1124 = vunpack.c.l.b16 %v277
      %v1125 = vunpack.c.h.b16 %v277
      %v1126 = vunpack.c.l.b16 %v278
      %v1127 = vunpack.c.h.b16 %v278
      %v1128 = vunpack.c.l.b16 %v279
      %v1129 = vunpack.c.h.b16 %v279
      %v1130 = vunpack.c.l.b16 %v280
      %v1131 = vunpack.c.h.b16 %v280
      %v1132 = vunpack.c.l.b16 %v281
      %v1133 = vunpack.c.h.b16 %v281
      %v1134 = vunpack.c.l.b16 %v282
      %v1135 = vunpack.c.h.b16 %v282
      %v1136 = vunpack.c.l.b16 %v283
      %v1137 = vunpack.c.h.b16 %v283
      %v1138 = vunpack.c.l.b16 %v284
      %v1139 = vunpack.c.h.b16 %v284
      %v1140 = vunpack.c.l.b16 %v285
      %v1141 = vunpack.c.h.b16 %v285
      %v1142 = vunpack.c.l.b16 %v286
      %v1143 = vunpack.c.h.b16 %v286
      %v1144 = vunpack.c.l.b16 %v287
      %v1145 = vunpack.c.h.b16 %v287
      %v1146 = vunpack.c.l.b16 %v288
      %v1147 = vunpack.c.h.b16 %v288
      %v1148 = vunpack.c.l.b16 %v289
      %v1149 = vunpack.c.h.b16 %v289
      %v1150 = vunpack.c.l.b16 %v290
      %v1151 = vunpack.c.h.b16 %v290
      %v1152 = vunpack.c.l.b16 %v291
      %v1153 = vunpack.c.h.b16 %v291
      %v1154 = vunpack.c.l.b16 %v292
      %v1155 = vunpack.c.h.b16 %v292
      %v1156 = vunpack.c.l.b16 %v293
      %v1157 = vunpack.c.h.b16 %v293
      %v1158 = vunpack.c.l.b16 %v294
      %v1159 = vunpack.c.h.b16 %v294
      %v1160 = vunpack.c.l.b16 %v295
      %v1161 = vunpack.c.h.b16 %v295
      %v1162 = vunpack.c.l.b16 %v296
      %v1163 = vunpack.c.h.b16 %v296
      %v1164 = vunpack.c.l.b16 %v297
      %v1165 = vunpack.c.h.b16 %v297
      %v1166 = vunpack.c.l.b16 %v298
      %v1167 = vunpack.c.h.b16 %v298
      %v1168 = vunpack.c.l.b16 %v299
      %v1169 = vunpack.c.h.b16 %v299
      %v1170 = vunpack.c.l.b16 %v300
      %v1171 = vunpack.c.h.b16 %v300
      %v1172 = vunpack.c.l.b16 %v301
      %v1173 = vunpack.c.h.b16 %v301
      %v1174 = vunpack.c.l.b16 %v302
      %v1175 = vunpack.c.h.b16 %v302
      %v1176 = vunpack.c.l.b16 %v303
      %v1177 = vunpack.c.h.b16 %v303
      %v1178 = vunpack.c.l.b16 %v304
      %v1179 = vunpack.c.h.b16 %v304
      %v1180 = vunpack.c.l.b16 %v305
      %v1181 = vunpack.c.h.b16 %v305
      %v1182 = vunpack.c.l.b16 %v306
      %v1183 = vunpack.c.h.b16 %v306
      %v1184 = vunpack.c.l.b16 %v307
      %v1185 = vunpack.c.h.b16 %v307
      %v1186 = vunpack.c.l.b16 %v308
      %v1187 = vunpack.c.h.b16 %v308
      %v1188 = vunpack.c.l.b16 %v309
      %v1189 = vunpack.c.h.b16 %v309
      %v1190 = vunpack.c.l.b16 %v310
      %v1191 = vunpack.c.h.b16 %v310
      %v1192 = vunpack.c.l.b16 %v311
      %v1193 = vunpack.c.h.b16 %v311
      %v1194 = vunpack.c.l.b16 %v312
      %v1195 = vunpack.c.h.b16 %v312
      %v1196 = vunpack.c.l.b16 %v313
      %v1197 = vunpack.c.h.b16 %v313
      %v1198 = vunpack.c.l.b16 %v314
      %v1199 = vunpack.c.h.b16 %v314
      %v1200 = vunpack.c.l.b16 %v315
      %v1201 = vunpack.c.h.b16 %v315
      %v1202 = vunpack.c.l.b16 %v316
      %v1203 = vunpack.c.h.b16 %v316
      %v1204 = vunpack.c.l.b16 %v317
      %v1205 = vunpack.c.h.b16 %v317
      %v1206 = vunpack.c.l.b16 %v318
      %v1207 = vunpack.c.h.b16 %v318
      %v1208 = vunpack.c.l.b16 %v319
      %v1209 = vunpack.c.h.b16 %v319
      %v1210 = vunpack.c.l.b16 %v320
      %v1211 = vunpack.c.h.b16 %v320
      %v1212 = vunpack.c.l.b16 %v321
      %v1213 = vunpack.c.h.b16 %v321
      %v1214 = vunpack.c.l.b16 %v322
      %v1215 = vunpack.c.h.b16 %v322
      %v1216 = vunpack.c.l.b16 %v323
      %v1217 = vunpack.c.h.b16 %v323
      %v1218 = vunpack.c.l.b16 %v324
      %v1219 = vunpack.c.h.b16 %v324
      %v1220 = vunpack.c.l.b16 %v325
      %v1221 = vunpack.c.h.b16 %v325
      %v1222 = vunpack.c.l.b16 %v326
      %v1223 = vunpack.c.h.b16 %v326
      %v1224 = vunpack.c.l.b16 %v327
      %v1225 = vunpack.c.h.b16 %v327
      %v1226 = vunpack.c.l.b16 %v328
      %v1227 = vunpack.c.h.b16 %v328
      %v1228 = vunpack.c.l.b16 %v329
      %v1229 = vunpack.c.h.b16 %v329
      %v1230 = vunpack.c.l.b16 %v330
      %v1231 = vunpack.c.h.b16 %v330
      %v1232 = vunpack.c.l.b16 %v331
      %v1233 = vunpack.c.h.b16 %v331
      %v1234 = vunpack.c.l.b16 %v332
      %v1235 = vunpack.c.h.b16 %v332
      %v1236 = vunpack.c.l.b16 %v333
      %v1237 = vunpack.c.h.b16 %v333
      %v1238 = vunpack.c.l.b16 %v334
      %v1239 = vunpack.c.h.b16 %v334
      %v1240 = vunpack.c.l.b16 %v335
      %v1241 = vunpack.c.h.b16 %v335
      %v1242 = vunpack.c.l.b16 %v336
      %v1243 = vunpack.c.h.b16 %v336
      %v1244 = vunpack.c.l.b16 %v337
      %v1245 = vunpack.c.h.b16 %v337
      %v1246 = vunpack.c.l.b16 %v338
      %v1247 = vunpack.c.h.b16 %v338
      %v1248 = vunpack.c.l.b16 %v339
      %v1249 = vunpack.c.h.b16 %v339
      %v1250 = vunpack.c.l.b16 %v340
      %v1251 = vunpack.c.h.b16 %v340
      %v1252 = vunpack.c.l.b16 %v341
      %v1253 = vunpack.c.h.b16 %v341
      %v1254 = vunpack.c.l.b16 %v342
      %v1255 = vunpack.c.h.b16 %v342
      %v1256 = vunpack.c.l.b16 %v343
      %v1257 = vunpack.c.h.b16 %v343
      %v1258 = vunpack.c.l.b16 %v344
      %v1259 = vunpack.c.h.b16 %v344
      %v1260 = vunpack.c.l.b16 %v345
      %v1261 = vunpack.c.h.b16 %v345
      %v1262 = vunpack.c.l.b16 %v346
      %v1263 = vunpack.c.h.b16 %v346
      %v1264 = vunpack.c.l.b16 %v347
      %v1265 = vunpack.c.h.b16 %v347
      %v1266 = vunpack.c.l.b16 %v348
      %v1267 = vunpack.c.h.b16 %v348
      %v1268 = vunpack.c.l.b16 %v349
      %v1269 = vunpack.c.h.b16 %v349
      %v1270 = vunpack.c.l.b16 %v350
      %v1271 = vunpack.c.h.b16 %v350
      %v1272 = vunpack.c.l.b16 %v351
      %v1273 = vunpack.c.h.b16 %v351
      %v1274 = vunpack.c.l.b16 %v352
      %v1275 = vunpack.c.h.b16 %v352
      %v1276 = vunpack.c.l.b16 %v353
      %v1277 = vunpack.c.h.b16 %v353
      %v1278 = vunpack.c.l.b16 %v354
      %v1279 = vunpack.c.h.b16 %v354
      %v1280 = vunpack.c.l.b16 %v355
      %v1281 = vunpack.c.h.b16 %v355
      %v1282 = vunpack.c.l.b16 %v356
      %v1283 = vunpack.c.h.b16 %v356
      %v1284 = vunpack.c.l.b16 %v357
      %v1285 = vunpack.c.h.b16 %v357
      %v1286 = vunpack.c.l.b16 %v358
      %v1287 = vunpack.c.h.b16 %v358
      %v1288 = vunpack.c.l.b16 %v359
      %v1289 = vunpack.c.h.b16 %v359
      %v1290 = vunpack.c.l.b16 %v360
      %v1291 = vunpack.c.h.b16 %v360
      %v1292 = vunpack.c.l.b16 %v361
      %v1293 = vunpack.c.h.b16 %v361
      %v1294 = vunpack.c.l.b16 %v362
      %v1295 = vunpack.c.h.b16 %v362
      %v1296 = vunpack.c.l.b16 %v363
      %v1297 = vunpack.c.h.b16 %v363
      %v1298 = vunpack.c.l.b16 %v364
      %v1299 = vunpack.c.h.b16 %v364
      %v1300 = vunpack.c.l.b16 %v365
      %v1301 = vunpack.c.h.b16 %v365
      %v1302 = vpack.c.b16 %v888, %v870
      %v1303 = vpack.c.b16 %v889, %v871
      %v1304 = vpack.c.b16 %v890, %v872
      %v1305 = vpack.c.b16 %v891, %v873
      %v1306 = vpack.c.b16 %v892, %v874
      %v1307 = vpack.c.b16 %v893, %v875
      %v1308 = vpack.c.b16 %v894, %v876
      %v1309 = vpack.c.b16 %v895, %v877
      %v1310 = vpack.c.b16 %v896, %v878
      %v1311 = vpack.c.b16 %v897, %v879
      %v1312 = vpack.c.b16 %v898, %v880
      %v1313 = vpack.c.b16 %v899, %v881
      %v1314 = vpack.c.b16 %v900, %v882
      %v1315 = vpack.c.b16 %v901, %v883
      %v1316 = vpack.c.b16 %v902, %v884
      %v1317 = vpack.c.b16 %v903, %v885
      %v1318 = vpack.c.b16 %v904, %v886
      %v1319 = vpack.c.b16 %v905, %v887
      %v1320 = vpack.c.b16 %v924, %v906
      %v1321 = vpack.c.b16 %v925, %v907
      %v1322 = vpack.c.b16 %v926, %v908
      %v1323 = vpack.c.b16 %v927, %v909
      %v1324 = vpack.c.b16 %v928, %v910
      %v1325 = vpack.c.b16 %v929, %v911
      %v1326 = vpack.c.b16 %v930, %v912
      %v1327 = vpack.c.b16 %v931, %v913
      %v1328 = vpack.c.b16 %v932, %v914
      %v1329 = vpack.c.b16 %v933, %v915
      %v1330 = vpack.c.b16 %v934, %v916
      %v1331 = vpack.c.b16 %v935, %v917
      %v1332 = vpack.c.b16 %v936, %v918
      %v1333 = vpack.c.b16 %v937, %v919
      %v1334 = vpack.c.b16 %v938, %v920
      %v1335 = vpack.c.b16 %v939, %v921
      %v1336 = vpack.c.b16 %v940, %v922
      %v1337 = vpack.c.b16 %v941, %v923
      %v1338 = vpack.c.b16 %v960, %v942
      %v1339 = vpack.c.b16 %v961, %v943
      %v1340 = vpack.c.b16 %v962, %v944
      %v1341 = vpack.c.b16 %v963, %v945
      %v1342 = vpack.c.b16 %v964, %v946
      %v1343 = vpack.c.b16 %v965, %v947
      %v1344 = vpack.c.b16 %v966, %v948
      %v1345 = vpack.c.b16 %v967, %v949
      %v1346 = vpack.c.b16 %v968, %v950
      %v1347 = vpack.c.b16 %v969, %v951
      %v1348 = vpack.c.b16 %v970, %v952
      %v1349 = vpack.c.b16 %v971, %v953
      %v1350 = vpack.c.b16 %v972, %v954
      %v1351 = vpack.c.b16 %v973, %v955
      %v1352 = vpack.c.b16 %v974, %v956
      %v1353 = vpack.c.b16 %v975, %v957
      %v1354 = vpack.c.b16 %v976, %v958
      %v1355 = vpack.c.b16 %v977, %v959
      %v1356 = vpack.c.b16 %v996, %v978
      %v1357 = vpack.c.b16 %v997, %v979
      %v1358 = vpack.c.b16 %v998, %v980
      %v1359 = vpack.c.b16 %v999, %v981
      %v1360 = vpack.c.b16 %v1000, %v982
      %v1361 = vpack.c.b16 %v1001, %v983
      %v1362 = vpack.c.b16 %v1002, %v984
      %v1363 = vpack.c.b16 %v1003, %v985
      %v1364 = vpack.c.b16 %v1004, %v986
      %v1365 = vpack.c.b16 %v1005, %v987
      %v1366 = vpack.c.b16 %v1006, %v988
      %v1367 = vpack.c.b16 %v1007, %v989
      %v1368 = vpack.c.b16 %v1008, %v990
      %v1369 = vpack.c.b16 %v1009, %v991
      %v1370 = vpack.c.b16 %v1010, %v992
      %v1371 = vpack.c.b16 %v1011, %v993
      %v1372 = vpack.c.b16 %v1012, %v994
      %v1373 = vpack.c.b16 %v1013, %v995
      %v1374 = vpack.c.b16 %v1032, %v1014
      %v1375 = vpack.c.b16 %v1033, %v1015
      %v1376 = vpack.c.b16 %v1034, %v1016
      %v1377 = vpack.c.b16 %v1035, %v1017
      %v1378 = vpack.c.b16 %v1036, %v1018
      %v1379 = vpack.c.b16 %v1037, %v1019
      %v1380 = vpack.c.b16 %v1038, %v1020
      %v1381 = vpack.c.b16 %v1039, %v1021
      %v1382 = vpack.c.b16 %v1040, %v1022
      %v1383 = vpack.c.b16 %v1041, %v1023
      %v1384 = vpack.c.b16 %v1042, %v1024
      %v1385 = vpack.c.b16 %v1043, %v1025
      %v1386 = vpack.c.b16 %v1044, %v1026
      %v1387 = vpack.c.b16 %v1045, %v1027
      %v1388 = vpack.c.b16 %v1046, %v1028
      %v1389 = vpack.c.b16 %v1047, %v1029
      %v1390 = vpack.c.b16 %v1048, %v1030
      %v1391 = vpack.c.b16 %v1049, %v1031
      %v1392 = vpack.c.b16 %v1068, %v1050
      %v1393 = vpack.c.b16 %v1069, %v1051
      %v1394 = vpack.c.b16 %v1070, %v1052
      %v1395 = vpack.c.b16 %v1071, %v1053
      %v1396 = vpack.c.b16 %v1072, %v1054
      %v1397 = vpack.c.b16 %v1073, %v1055
      %v1398 = vpack.c.b16 %v1074, %v1056
      %v1399 = vpack.c.b16 %v1075, %v1057
      %v1400 = vpack.c.b16 %v1076, %v1058
      %v1401 = vpack.c.b16 %v1077, %v1059
      %v1402 = vpack.c.b16 %v1078, %v1060
      %v1403 = vpack.c.b16 %v1079, %v1061
      %v1404 = vpack.c.b16 %v1080, %v1062
      %v1405 = vpack.c.b16 %v1081, %v1063
      %v1406 = vpack.c.b16 %v1082, %v1064
      %v1407 = vpack.c.b16 %v1083, %v1065
      %v1408 = vpack.c.b16 %v1084, %v1066
      %v1409 = vpack.c.b16 %v1085, %v1067
      %v1410 = vpack.c.b16 %v1104, %v1086
      %v1411 = vpack.c.b16 %v1105, %v1087
      %v1412 = vpack.c.b16 %v1106, %v1088
      %v1413 = vpack.c.b16 %v1107, %v1089
      %v1414 = vpack.c.b16 %v1108, %v1090
      %v1415 = vpack.c.b16 %v1109, %v1091
      %v1416 = vpack.c.b16 %v1110, %v1092
      %v1417 = vpack.c.b16 %v1111, %v1093
      %v1418 = vpack.c.b16 %v1112, %v1094
      %v1419 = vpack.c.b16 %v1113, %v1095
      %v1420 = vpack.c.b16 %v1114, %v1096
      %v1421 = vpack.c.b16 %v1115, %v1097
      %v1422 = vpack.c.b16 %v1116, %v1098
      %v1423 = vpack.c.b16 %v1117, %v1099
      %v1424 = vpack.c.b16 %v1118, %v1100
      %v1425 = vpack.c.b16 %v1119, %v1101
      %v1426 = vpack.c.b16 %v1120, %v1102
      %v1427 = vpack.c.b16 %v1121, %v1103
      %v1428 = vpack.c.b16 %v1140, %v1122
      %v1429 = vpack.c.b16 %v1141, %v1123
      %v1430 = vpack.c.b16 %v1142, %v1124
      %v1431 = vpack.c.b16 %v1143, %v1125
      %v1432 = vpack.c.b16 %v1144, %v1126
      %v1433 = vpack.c.b16 %v1145, %v1127
      %v1434 = vpack.c.b16 %v1146, %v1128
      %v1435 = vpack.c.b16 %v1147, %v1129
      %v1436 = vpack.c.b16 %v1148, %v1130
      %v1437 = vpack.c.b16 %v1149, %v1131
      %v1438 = vpack.c.b16 %v1150, %v1132
      %v1439 = vpack.c.b16 %v1151, %v1133
      %v1440 = vpack.c.b16 %v1152, %v1134
      %v1441 = vpack.c.b16 %v1153, %v1135
      %v1442 = vpack.c.b16 %v1154, %v1136
      %v1443 = vpack.c.b16 %v1155, %v1137
      %v1444 = vpack.c.b16 %v1156, %v1138
      %v1445 = vpack.c.b16 %v1157, %v1139
      %v1446 = vpack.c.b16 %v1176, %v1158
      %v1447 = vpack.c.b16 %v1177, %v1159
      %v1448 = vpack.c.b16 %v1178, %v1160
      %v1449 = vpack.c.b16 %v1179, %v1161
      %v1450 = vpack.c.b16 %v1180, %v1162
      %v1451 = vpack.c.b16 %v1181, %v1163
      %v1452 = vpack.c.b16 %v1182, %v1164
      %v1453 = vpack.c.b16 %v1183, %v1165
      %v1454 = vpack.c.b16 %v1184, %v1166
      %v1455 = vpack.c.b16 %v1185, %v1167
      %v1456 = vpack.c.b16 %v1186, %v1168
      %v1457 = vpack.c.b16 %v1187, %v1169
      %v1458 = vpack.c.b16 %v1188, %v1170
      %v1459 = vpack.c.b16 %v1189, %v1171
      %v1460 = vpack.c.b16 %v1190, %v1172
      %v1461 = vpack.c.b16 %v1191, %v1173
      %v1462 = vpack.c.b16 %v1192, %v1174
      %v1463 = vpack.c.b16 %v1193, %v1175
      %v1464 = vpack.c.b16 %v1212, %v1194
      %v1465 = vpack.c.b16 %v1213, %v1195
      %v1466 = vpack.c.b16 %v1214, %v1196
      %v1467 = vpack.c.b16 %v1215, %v1197
      %v1468 = vpack.c.b16 %v1216, %v1198
      %v1469 = vpack.c.b16 %v1217, %v1199
      %v1470 = vpack.c.b16 %v1218, %v1200
      %v1471 = vpack.c.b16 %v1219, %v1201
      %v1472 = vpack.c.b16 %v1220, %v1202
      %v1473 = vpack.c.b16 %v1221, %v1203
      %v1474 = vpack.c.b16 %v1222, %v1204
      %v1475 = vpack.c.b16 %v1223, %v1205
      %v1476 = vpack.c.b16 %v1224, %v1206
      %v1477 = vpack.c.b16 %v1225, %v1207
      %v1478 = vpack.c.b16 %v1226, %v1208
      %v1479 = vpack.c.b16 %v1227, %v1209
      %v1480 = vpack.c.b16 %v1228, %v1210
      %v1481 = vpack.c.b16 %v1229, %v1211
      %v1482 = vpack.c.b16 %v1248, %v1230
      %v1483 = vpack.c.b16 %v1249, %v1231
      %v1484 = vpack.c.b16 %v1250, %v1232
      %v1485 = vpack.c.b16 %v1251, %v1233
      %v1486 = vpack.c.b16 %v1252, %v1234
      %v1487 = vpack.c.b16 %v1253, %v1235
      %v1488 = vpack.c.b16 %v1254, %v1236
      %v1489 = vpack.c.b16 %v1255, %v1237
      %v1490 = vpack.c.b16 %v1256, %v1238
      %v1491 = vpack.c.b16 %v1257, %v1239
      %v1492 = vpack.c.b16 %v1258, %v1240
      %v1493 = vpack.c.b16 %v1259, %v1241
      %v1494 = vpack.c.b16 %v1260, %v1242
      %v1495 = vpack.c.b16 %v1261, %v1243
      %v1496 = vpack.c.b16 %v1262, %v1244
      %v1497 = vpack.c.b16 %v1263, %v1245
      %v1498 = vpack.c.b16 %v1264, %v1246
      %v1499 = vpack.c.b16 %v1265, %v1247
      %v1500 = vpack.c.b16 %v1284, %v1266
      %v1501 = vpack.c.b16 %v1285, %v1267
      %v1502 = vpack.c.b16 %v1286, %v1268
      %v1503 = vpack.c.b16 %v1287, %v1269
      %v1504 = vpack.c.b16 %v1288, %v1270
      %v1505 = vpack.c.b16 %v1289, %v1271
      %v1506 = vpack.c.b16 %v1290, %v1272
      %v1507 = vpack.c.b16 %v1291, %v1273
      %v1508 = vpack.c.b16 %v1292, %v1274
      %v1509 = vpack.c.b16 %v1293, %v1275
      %v1510 = vpack.c.b16 %v1294, %v1276
      %v1511 = vpack.c.b16 %v1295, %v1277
      %v1512 = vpack.c.b16 %v1296, %v1278
      %v1513 = vpack.c.b16 %v1297, %v1279
      %v1514 = vpack.c.b16 %v1298, %v1280
      %v1515 = vpack.c.b16 %v1299, %v1281
      %v1516 = vpack.c.b16 %v1300, %v1282
      %v1517 = vpack.c.b16 %v1301, %v1283
      %v2022 = vunpack.c.l.b16 %v366
      %v2023 = vunpack.c.l.b16 %v367
      %v2024 = vunpack.c.l.b16 %v368
      %v2025 = vunpack.c.l.b16 %v369
      %v2026 = vunpack.c.l.b16 %v370
      %v2027 = vunpack.c.l.b16 %v371
      %v2028 = vunpack.c.l.b16 %v372
      %v2029 = vunpack.c.l.b16 %v373
      %v2030 = vunpack.c.l.b16 %v374
      %v2031 = vunpack.c.l.b16 %v375
      %v2032 = vunpack.c.l.b16 %v376
      %v2033 = vunpack.c.l.b16 %v377
      %v2034 = vunpack.c.l.b16 %v378
      %v2035 = vunpack.c.l.b16 %v379
      %v2036 = vunpack.c.l.b16 %v380
      %v2037 = vunpack.c.l.b16 %v381
      %v2038 = vunpack.c.l.b16 %v382
      %v2039 = vunpack.c.l.b16 %v383
      %v2040 = vunpack.c.l.b16 %v384
      %v2041 = vunpack.c.l.b16 %v385
      %v2042 = vunpack.c.l.b16 %v386
      %v2043 = vunpack.c.l.b16 %v387
      %v2044 = vunpack.c.l.b16 %v388
      %v2045 = vunpack.c.l.b16 %v389
      %v2046 = vunpack.c.l.b16 %v390
      %v2047 = vunpack.c.l.b16 %v391
      %v2048 = vunpack.c.l.b16 %v392
      %v2049 = vunpack.c.l.b16 %v393
      %v2050 = vunpack.c.l.b16 %v394
      %v2051 = vunpack.c.l.b16 %v395
      %v2052 = vunpack.c.l.b16 %v396
      %v2053 = vunpack.c.l.b16 %v397
      %v2054 = vunpack.c.l.b16 %v398
      %v2055 = vunpack.c.l.b16 %v399
      %v2056 = vunpack.c.l.b16 %v400
      %v2057 = vunpack.c.l.b16 %v401
      %v2058 = vunpack.c.l.b16 %v402
      %v2059 = vunpack.c.l.b16 %v403
      %v2060 = vunpack.c.l.b16 %v404
      %v2061 = vunpack.c.l.b16 %v405
      %v2062 = vunpack.c.l.b16 %v406
      %v2063 = vunpack.c.l.b16 %v407
      %v2064 = vunpack.c.l.b16 %v408
      %v2065 = vunpack.c.l.b16 %v409
      %v2066 = vunpack.c.l.b16 %v410
      %v2067 = vunpack.c.l.b16 %v411
      %v2068 = vunpack.c.l.b16 %v412
      %v2069 = vunpack.c.l.b16 %v413
      %v2070 = vunpack.c.l.b16 %v414
      %v2071 = vunpack.c.l.b16 %v415
      %v2072 = vunpack.c.l.b16 %v416
      %v2073 = vunpack.c.l.b16 %v417
      %v2074 = vunpack.c.l.b16 %v418
      %v2075 = vunpack.c.l.b16 %v419
      %v2076 = vunpack.c.l.b16 %v420
      %v2077 = vunpack.c.l.b16 %v421
      %v2078 = vunpack.c.l.b16 %v422
      %v2079 = vunpack.c.l.b16 %v423
      %v2080 = vunpack.c.l.b16 %v424
      %v2081 = vunpack.c.l.b16 %v425
      %v2082 = vunpack.c.l.b16 %v426
      %v2083 = vunpack.c.l.b16 %v427
      %v2084 = vunpack.c.l.b16 %v428
      %v2085 = vunpack.c.l.b16 %v429
      %v2086 = vunpack.c.l.b16 %v430
      %v2087 = vunpack.c.l.b16 %v431
      %v2088 = vunpack.c.l.b16 %v432
      %v2089 = vunpack.c.l.b16 %v433
      %v2090 = vunpack.c.l.b16 %v434
      %v2091 = vunpack.c.l.b16 %v435
      %v2092 = vunpack.c.l.b16 %v436
      %v2093 = vunpack.c.l.b16 %v437
      %v2094 = vunpack.c.l.b16 %v438
      %v2095 = vunpack.c.l.b16 %v439
      %v2096 = vunpack.c.l.b16 %v440
      %v2097 = vunpack.c.l.b16 %v441
      %v2098 = vunpack.c.l.b16 %v442
      %v2099 = vunpack.c.l.b16 %v443
      %v2100 = vunpack.c.l.b16 %v444
      %v2101 = vunpack.c.l.b16 %v445
      %v2102 = vunpack.c.l.b16 %v446
      %v2103 = vunpack.c.l.b16 %v447
      %v2104 = vunpack.c.l.b16 %v448
      %v2105 = vunpack.c.l.b16 %v449
      %v2106 = vunpack.c.l.b16 %v450
      %v2107 = vunpack.c.l.b16 %v451
      %v2108 = vunpack.c.l.b16 %v452
      %v2109 = vunpack.c.l.b16 %v453
      %v2110 = vunpack.c.l.b16 %v454
      %v2111 = vunpack.c.l.b16 %v455
      %v2112 = vunpack.c.l.b16 %v456
      %v2113 = vunpack.c.l.b16 %v457
      %v2114 = vunpack.c.l.b16 %v458
      %v2115 = vunpack.c.l.b16 %v459
      %v2116 = vunpack.c.l.b16 %v460
      %v2117 = vunpack.c.l.b16 %v461
      %v2118 = vunpack.c.l.b16 %v462
      %v2119 = vunpack.c.l.b16 %v463
      %v2120 = vunpack.c.l.b16 %v464
      %v2121 = vunpack.c.l.b16 %v465
      %v2122 = vunpack.c.l.b16 %v466
      %v2123 = vunpack.c.l.b16 %v467
      %v2124 = vunpack.c.l.b16 %v468
      %v2125 = vunpack.c.l.b16 %v469
      %v2126 = vunpack.c.l.b16 %v470
      %v2127 = vunpack.c.l.b16 %v471
      %v2128 = vunpack.c.l.b16 %v472
      %v2129 = vunpack.c.l.b16 %v473
      %v2130 = vunpack.c.l.b16 %v474
      %v2131 = vunpack.c.l.b16 %v475
      %v2132 = vunpack.c.l.b16 %v476
      %v2133 = vunpack.c.l.b16 %v477
      %v2134 = vunpack.c.l.b16 %v478
      %v2135 = vunpack.c.l.b16 %v479
      %v2136 = vunpack.c.l.b16 %v480
      %v2137 = vunpack.c.l.b16 %v481
      %v2138 = vunpack.c.l.b16 %v482
      %v2139 = vunpack.c.l.b16 %v483
      %v2140 = vunpack.c.l.b16 %v484
      %v2141 = vunpack.c.l.b16 %v485
      %v2142 = vunpack.c.l.b16 %v486
      %v2143 = vunpack.c.l.b16 %v487
      %v2144 = vunpack.c.l.b16 %v488
      %v2145 = vunpack.c.l.b16 %v489
      %v2146 = vunpack.c.l.b16 %v490
      %v2147 = vunpack.c.l.b16 %v491
      %v2148 = vunpack.c.l.b16 %v492
      %v2149 = vunpack.c.l.b16 %v493
      %v2150 = vunpack.c.l.b16 %v494
      %v2151 = vunpack.c.l.b16 %v495
      %v2152 = vunpack.c.l.b16 %v496
      %v2153 = vunpack.c.l.b16 %v497
      %v2154 = vunpack.c.l.b16 %v498
      %v2155 = vunpack.c.l.b16 %v499
      %v2156 = vunpack.c.l.b16 %v500
      %v2157 = vunpack.c.l.b16 %v501
      %v2158 = vunpack.c.l.b16 %v502
      %v2159 = vunpack.c.l.b16 %v503
      %v2160 = vunpack.c.l.b16 %v504
      %v2161 = vunpack.c.l.b16 %v505
      %v2162 = vunpack.c.l.b16 %v506
      %v2163 = vunpack.c.l.b16 %v507
      %v2164 = vunpack.c.l.b16 %v508
      %v2165 = vunpack.c.l.b16 %v509
      %v2166 = vunpack.c.l.b16 %v510
      %v2167 = vunpack.c.l.b16 %v511
      %v2168 = vunpack.c.l.b16 %v512
      %v2169 = vunpack.c.l.b16 %v513
      %v2170 = vunpack.c.l.b16 %v514
      %v2171 = vunpack.c.l.b16 %v515
      %v2172 = vunpack.c.l.b16 %v516
      %v2173 = vunpack.c.l.b16 %v517
      %v2174 = vunpack.c.l.b16 %v518
      %v2175 = vunpack.c.l.b16 %v519
      %v2176 = vunpack.c.l.b16 %v520
      %v2177 = vunpack.c.l.b16 %v521
      %v2178 = vunpack.c.l.b16 %v522
      %v2179 = vunpack.c.l.b16 %v523
      %v2180 = vunpack.c.l.b16 %v524
      %v2181 = vunpack.c.l.b16 %v525
      %v2182 = vunpack.c.l.b16 %v526
      %v2183 = vunpack.c.l.b16 %v527
      %v2184 = vunpack.c.l.b16 %v528
      %v2185 = vunpack.c.l.b16 %v529
      %v2186 = vunpack.c.l.b16 %v530
      %v2187 = vunpack.c.l.b16 %v531
      %v2188 = vunpack.c.l.b16 %v532
      %v2189 = vunpack.c.l.b16 %v533
      %v2190 = vunpack.c.l.b16 %v534
      %v2191 = vunpack.c.l.b16 %v535
      %v2192 = vunpack.c.l.b16 %v536
      %v2193 = vunpack.c.l.b16 %v537
      %v2194 = vunpack.c.l.b16 %v538
      %v2195 = vunpack.c.l.b16 %v539
      %v2196 = vunpack.c.l.b16 %v540
      %v2197 = vunpack.c.l.b16 %v541
      %v2198 = vunpack.c.l.b16 %v542
      %v2199 = vunpack.c.l.b16 %v543
      %v2200 = vunpack.c.l.b16 %v544
      %v2201 = vunpack.c.l.b16 %v545
      %v2202 = vunpack.c.l.b16 %v546
      %v2203 = vunpack.c.l.b16 %v547
      %v2204 = vunpack.c.l.b16 %v548
      %v2205 = vunpack.c.l.b16 %v549
      %v2206 = vunpack.c.l.b16 %v550
      %v2207 = vunpack.c.l.b16 %v551
      %v2208 = vunpack.c.l.b16 %v552
      %v2209 = vunpack.c.l.b16 %v553
      %v2210 = vunpack.c.l.b16 %v554
      %v2211 = vunpack.c.l.b16 %v555
      %v2212 = vunpack.c.l.b16 %v556
      %v2213 = vunpack.c.l.b16 %v557
      %v2214 = vunpack.c.l.b16 %v558
      %v2215 = vunpack.c.l.b16 %v559
      %v2216 = vunpack.c.l.b16 %v560
      %v2217 = vunpack.c.l.b16 %v561
      %v2218 = vunpack.c.l.b16 %v562
      %v2219 = vunpack.c.l.b16 %v563
      %v2220 = vunpack.c.l.b16 %v564
      %v2221 = vunpack.c.l.b16 %v565
      %v2222 = vunpack.c.l.b16 %v566
      %v2223 = vunpack.c.l.b16 %v567
      %v2224 = vunpack.c.l.b16 %v568
      %v2225 = vunpack.c.l.b16 %v569
      %v2226 = vunpack.c.l.b16 %v570
      %v2227 = vunpack.c.l.b16 %v571
      %v2228 = vunpack.c.l.b16 %v572
      %v2229 = vunpack.c.l.b16 %v573
      %v2230 = vunpack.c.l.b16 %v574
      %v2231 = vunpack.c.l.b16 %v575
      %v2232 = vunpack.c.l.b16 %v576
      %v2233 = vunpack.c.l.b16 %v577
      %v2234 = vunpack.c.l.b16 %v578
      %v2235 = vunpack.c.l.b16 %v579
      %v2236 = vunpack.c.l.b16 %v580
      %v2237 = vunpack.c.l.b16 %v581
      %v2238 = vunpack.c.l.b16 %v582
      %v2239 = vunpack.c.l.b16 %v583
      %v2240 = vunpack.c.l.b16 %v584
      %v2241 = vunpack.c.l.b16 %v585
      %v2242 = vunpack.c.l.b16 %v586
      %v2243 = vunpack.c.l.b16 %v587
      %v2244 = vunpack.c.l.b16 %v588
      %v2245 = vunpack.c.l.b16 %v589
      %v2246 = vunpack.c.l.b16 %v590
      %v2247 = vunpack.c.l.b16 %v591
      %v2248 = vunpack.c.l.b16 %v592
      %v2249 = vunpack.c.l.b16 %v593
      %v2250 = vunpack.c.l.b16 %v594
      %v2251 = vunpack.c.l.b16 %v595
      %v2252 = vunpack.c.l.b16 %v596
      %v2253 = vunpack.c.l.b16 %v597
      %v2254 = vunpack.c.l.b16 %v598
      %v2255 = vunpack.c.l.b16 %v599
      %v2256 = vunpack.c.l.b16 %v600
      %v2257 = vunpack.c.l.b16 %v601
      %v2258 = vunpack.c.l.b16 %v602
      %v2259 = vunpack.c.l.b16 %v603
      %v2260 = vunpack.c.l.b16 %v604
      %v2261 = vunpack.c.l.b16 %v605
      %v2262 = vunpack.c.l.b16 %v606
      %v2263 = vunpack.c.l.b16 %v607
      %v2264 = vunpack.c.l.b16 %v608
      %v2265 = vunpack.c.l.b16 %v609
      %v2266 = vunpack.c.l.b16 %v610
      %v2267 = vunpack.c.l.b16 %v611
      %v2268 = vunpack.c.l.b16 %v612
      %v2269 = vunpack.c.l.b16 %v613
      %v2270 = vunpack.c.l.b16 %v614
      %v2271 = vunpack.c.l.b16 %v615
      %v2272 = vunpack.c.l.b16 %v616
      %v2273 = vunpack.c.l.b16 %v617
      %v2274 = vunpack.c.l.b16 %v618
      %v2275 = vunpack.c.l.b16 %v619
      %v2276 = vunpack.c.l.b16 %v620
      %v2277 = vunpack.c.l.b16 %v621
      %v2278 = vunpack.c.l.b16 %v622
      %v2279 = vunpack.c.l.b16 %v623
      %v2280 = vunpack.c.l.b16 %v624
      %v2281 = vunpack.c.l.b16 %v625
      %v2282 = vunpack.c.l.b16 %v626
      %v2283 = vunpack.c.l.b16 %v627
      %v2284 = vunpack.c.l.b16 %v628
      %v2285 = vunpack.c.l.b16 %v629
      %v2286 = vunpack.c.l.b16 %v630
      %v2287 = vunpack.c.l.b16 %v631
      %v2288 = vunpack.c.l.b16 %v632
      %v2289 = vunpack.c.l.b16 %v633
      %v2290 = vunpack.c.l.b16 %v634
      %v2291 = vunpack.c.l.b16 %v635
      %v2292 = vunpack.c.l.b16 %v636
      %v2293 = vunpack.c.l.b16 %v637
      %v2294 = vunpack.c.l.b16 %v638
      %v2295 = vunpack.c.l.b16 %v639
      %v2296 = vunpack.c.l.b16 %v640
      %v2297 = vunpack.c.l.b16 %v641
      %v2298 = vunpack.c.l.b16 %v642
      %v2299 = vunpack.c.l.b16 %v643
      %v2300 = vunpack.c.l.b16 %v644
      %v2301 = vunpack.c.l.b16 %v645
      %v2302 = vunpack.c.l.b16 %v646
      %v2303 = vunpack.c.l.b16 %v647
      %v2304 = vunpack.c.l.b16 %v648
      %v2305 = vunpack.c.l.b16 %v649
      %v2306 = vunpack.c.l.b16 %v650
      %v2307 = vunpack.c.l.b16 %v651
      %v2308 = vunpack.c.l.b16 %v652
      %v2309 = vunpack.c.l.b16 %v653
      %v2310 = vpack.c.b16 %v2023, %v2022
      %v2311 = vpack.c.b16 %v2025, %v2024
      %v2312 = vpack.c.b16 %v2027, %v2026
      %v2313 = vpack.c.b16 %v2029, %v2028
      %v2314 = vpack.c.b16 %v2031, %v2030
      %v2315 = vpack.c.b16 %v2033, %v2032
      %v2316 = vpack.c.b16 %v2035, %v2034
      %v2317 = vpack.c.b16 %v2037, %v2036
      %v2318 = vpack.c.b16 %v2039, %v2038
      %v2319 = vpack.c.b16 %v2041, %v2040
      %v2320 = vpack.c.b16 %v2043, %v2042
      %v2321 = vpack.c.b16 %v2045, %v2044
      %v2322 = vpack.c.b16 %v2047, %v2046
      %v2323 = vpack.c.b16 %v2049, %v2048
      %v2324 = vpack.c.b16 %v2051, %v2050
      %v2325 = vpack.c.b16 %v2053, %v2052
      %v2326 = vpack.c.b16 %v2055, %v2054
      %v2327 = vpack.c.b16 %v2057, %v2056
      %v2328 = vpack.c.b16 %v2059, %v2058
      %v2329 = vpack.c.b16 %v2061, %v2060
      %v2330 = vpack.c.b16 %v2063, %v2062
      %v2331 = vpack.c.b16 %v2065, %v2064
      %v2332 = vpack.c.b16 %v2067, %v2066
      %v2333 = vpack.c.b16 %v2069, %v2068
      %v2334 = vpack.c.b16 %v2071, %v2070
      %v2335 = vpack.c.b16 %v2073, %v2072
      %v2336 = vpack.c.b16 %v2075, %v2074
      %v2337 = vpack.c.b16 %v2077, %v2076
      %v2338 = vpack.c.b16 %v2079, %v2078
      %v2339 = vpack.c.b16 %v2081, %v2080
      %v2340 = vpack.c.b16 %v2083, %v2082
      %v2341 = vpack.c.b16 %v2085, %v2084
      %v2342 = vpack.c.b16 %v2087, %v2086
      %v2343 = vpack.c.b16 %v2089, %v2088
      %v2344 = vpack.c.b16 %v2091, %v2090
      %v2345 = vpack.c.b16 %v2093, %v2092
      %v2346 = vpack.c.b16 %v2095, %v2094
      %v2347 = vpack.c.b16 %v2097, %v2096
      %v2348 = vpack.c.b16 %v2099, %v2098
      %v2349 = vpack.c.b16 %v2101, %v2100
      %v2350 = vpack.c.b16 %v2103, %v2102
      %v2351 = vpack.c.b16 %v2105, %v2104
      %v2352 = vpack.c.b16 %v2107, %v2106
      %v2353 = vpack.c.b16 %v2109, %v2108
      %v2354 = vpack.c.b16 %v2111, %v2110
      %v2355 = vpack.c.b16 %v2113, %v2112
      %v2356 = vpack.c.b16 %v2115, %v2114
      %v2357 = vpack.c.b16 %v2117, %v2116
      %v2358 = vpack.c.b16 %v2119, %v2118
      %v2359 = vpack.c.b16 %v2121, %v2120
      %v2360 = vpack.c.b16 %v2123, %v2122
      %v2361 = vpack.c.b16 %v2125, %v2124
      %v2362 = vpack.c.b16 %v2127, %v2126
      %v2363 = vpack.c.b16 %v2129, %v2128
      %v2364 = vpack.c.b16 %v2131, %v2130
      %v2365 = vpack.c.b16 %v2133, %v2132
      %v2366 = vpack.c.b16 %v2135, %v2134
      %v2367 = vpack.c.b16 %v2137, %v2136
      %v2368 = vpack.c.b16 %v2139, %v2138
      %v2369 = vpack.c.b16 %v2141, %v2140
      %v2370 = vpack.c.b16 %v2143, %v2142
      %v2371 = vpack.c.b16 %v2145, %v2144
      %v2372 = vpack.c.b16 %v2147, %v2146
      %v2373 = vpack.c.b16 %v2149, %v2148
      %v2374 = vpack.c.b16 %v2151, %v2150
      %v2375 = vpack.c.b16 %v2153, %v2152
      %v2376 = vpack.c.b16 %v2155, %v2154
      %v2377 = vpack.c.b16 %v2157, %v2156
      %v2378 = vpack.c.b16 %v2159, %v2158
      %v2379 = vpack.c.b16 %v2161, %v2160
      %v2380 = vpack.c.b16 %v2163, %v2162
      %v2381 = vpack.c.b16 %v2165, %v2164
      %v2382 = vpack.c.b16 %v2167, %v2166
      %v2383 = vpack.c.b16 %v2169, %v2168
      %v2384 = vpack.c.b16 %v2171, %v2170
      %v2385 = vpack.c.b16 %v2173, %v2172
      %v2386 = vpack.c.b16 %v2175, %v2174
      %v2387 = vpack.c.b16 %v2177, %v2176
      %v2388 = vpack.c.b16 %v2179, %v2178
      %v2389 = vpack.c.b16 %v2181, %v2180
      %v2390 = vpack.c.b16 %v2183, %v2182
      %v2391 = vpack.c.b16 %v2185, %v2184
      %v2392 = vpack.c.b16 %v2187, %v2186
      %v2393 = vpack.c.b16 %v2189, %v2188
      %v2394 = vpack.c.b16 %v2191, %v2190
      %v2395 = vpack.c.b16 %v2193, %v2192
      %v2396 = vpack.c.b16 %v2195, %v2194
      %v2397 = vpack.c.b16 %v2197, %v2196
      %v2398 = vpack.c.b16 %v2199, %v2198
      %v2399 = vpack.c.b16 %v2201, %v2200
      %v2400 = vpack.c.b16 %v2203, %v2202
      %v2401 = vpack.c.b16 %v2205, %v2204
      %v2402 = vpack.c.b16 %v2207, %v2206
      %v2403 = vpack.c.b16 %v2209, %v2208
      %v2404 = vpack.c.b16 %v2211, %v2210
      %v2405 = vpack.c.b16 %v2213, %v2212
      %v2406 = vpack.c.b16 %v2215, %v2214
      %v2407 = vpack.c.b16 %v2217, %v2216
      %v2408 = vpack.c.b16 %v2219, %v2218
      %v2409 = vpack.c.b16 %v2221, %v2220
      %v2410 = vpack.c.b16 %v2223, %v2222
      %v2411 = vpack.c.b16 %v2225, %v2224
      %v2412 = vpack.c.b16 %v2227, %v2226
      %v2413 = vpack.c.b16 %v2229, %v2228
      %v2414 = vpack.c.b16 %v2231, %v2230
      %v2415 = vpack.c.b16 %v2233, %v2232
      %v2416 = vpack.c.b16 %v2235, %v2234
      %v2417 = vpack.c.b16 %v2237, %v2236
      %v2418 = vpack.c.b16 %v2239, %v2238
      %v2419 = vpack.c.b16 %v2241, %v2240
      %v2420 = vpack.c.b16 %v2243, %v2242
      %v2421 = vpack.c.b16 %v2245, %v2244
      %v2422 = vpack.c.b16 %v2247, %v2246
      %v2423 = vpack.c.b16 %v2249, %v2248
      %v2424 = vpack.c.b16 %v2251, %v2250
      %v2425 = vpack.c.b16 %v2253, %v2252
      %v2426 = vpack.c.b16 %v2255, %v2254
      %v2427 = vpack.c.b16 %v2257, %v2256
      %v2428 = vpack.c.b16 %v2259, %v2258
      %v2429 = vpack.c.b16 %v2261, %v2260
      %v2430 = vpack.c.b16 %v2263, %v2262
      %v2431 = vpack.c.b16 %v2265, %v2264
      %v2432 = vpack.c.b16 %v2267, %v2266
      %v2433 = vpack.c.b16 %v2269, %v2268
      %v2434 = vpack.c.b16 %v2271, %v2270
      %v2435 = vpack.c.b16 %v2273, %v2272
      %v2436 = vpack.c.b16 %v2275, %v2274
      %v2437 = vpack.c.b16 %v2277, %v2276
      %v2438 = vpack.c.b16 %v2279, %v2278
      %v2439 = vpack.c.b16 %v2281, %v2280
      %v2440 = vpack.c.b16 %v2283, %v2282
      %v2441 = vpack.c.b16 %v2285, %v2284
      %v2442 = vpack.c.b16 %v2287, %v2286
      %v2443 = vpack.c.b16 %v2289, %v2288
      %v2444 = vpack.c.b16 %v2291, %v2290
      %v2445 = vpack.c.b16 %v2293, %v2292
      %v2446 = vpack.c.b16 %v2295, %v2294
      %v2447 = vpack.c.b16 %v2297, %v2296
      %v2448 = vpack.c.b16 %v2299, %v2298
      %v2449 = vpack.c.b16 %v2301, %v2300
      %v2450 = vpack.c.b16 %v2303, %v2302
      %v2451 = vpack.c.b16 %v2305, %v2304
      %v2452 = vpack.c.b16 %v2307, %v2306
      %v2453 = vpack.c.b16 %v2309, %v2308
      %2598 = vmatpush.bf16.msra.mxu0 %v2317
      %2599 = vmatpush.bf16.msra.mxu0 %v2316
      %2600 = vmatpush.bf16.msra.mxu0 %v2315
      %2601 = vmatpush.bf16.msra.mxu0 %v2314
      %2602 = vmatpush.bf16.msra.mxu0 %v2313
      %2603 = vmatpush.bf16.msra.mxu0 %v2312
      %2604 = vmatpush.bf16.msra.mxu0 %v2311
      %2605 = vmatpush.bf16.msra.mxu0 %v2310
      %2606 = vmatmul.bf16.gmra.mxu0 %v1302
      %v2607 = vpop.f32.mrf.mxu0
      %v2608 = vadd.f32 0.0, %v2607
      %v2609 = vpop.f32.mrf.mxu0
      %v2610 = vadd.f32 0.0, %v2609
      %2611 = vmatmul.bf16.gmra.mxu0 %v1320
      %v2612 = vpop.f32.mrf.mxu0
      %v2613 = vadd.f32 0.0, %v2612
      %v2614 = vpop.f32.mrf.mxu0
      %v2615 = vadd.f32 0.0, %v2614
      %2616 = vmatmul.bf16.gmra.mxu0 %v1338
      %v2617 = vpop.f32.mrf.mxu0
      %v2618 = vadd.f32 0.0, %v2617
      %v2619 = vpop.f32.mrf.mxu0
      %v2620 = vadd.f32 0.0, %v2619
      %2621 = vmatmul.bf16.gmra.mxu0 %v1356
      %v2622 = vpop.f32.mrf.mxu0
      %v2623 = vadd.f32 0.0, %v2622
      %v2624 = vpop.f32.mrf.mxu0
      %v2625 = vadd.f32 0.0, %v2624
      %2626 = vmatmul.bf16.gmra.mxu0 %v1374
      %v2627 = vpop.f32.mrf.mxu0
      %v2628 = vadd.f32 0.0, %v2627
      %v2629 = vpop.f32.mrf.mxu0
      %v2630 = vadd.f32 0.0, %v2629
      %2631 = vmatmul.bf16.gmra.mxu0 %v1392
      %v2632 = vpop.f32.mrf.mxu0
      %v2633 = vadd.f32 0.0, %v2632
      %v2634 = vpop.f32.mrf.mxu0
      %v2635 = vadd.f32 0.0, %v2634
      %2636 = vmatmul.bf16.gmra.mxu0 %v1410
      %v2637 = vpop.f32.mrf.mxu0
      %v2638 = vadd.f32 0.0, %v2637
      %v2639 = vpop.f32.mrf.mxu0
      %v2640 = vadd.f32 0.0, %v2639
      %2641 = vmatmul.bf16.gmra.mxu0 %v1428
      %v2642 = vpop.f32.mrf.mxu0
      %v2643 = vadd.f32 0.0, %v2642
      %v2644 = vpop.f32.mrf.mxu0
      %v2645 = vadd.f32 0.0, %v2644
      %2646 = vmatmul.bf16.gmra.mxu0 %v1446
      %v2647 = vpop.f32.mrf.mxu0
      %v2648 = vadd.f32 0.0, %v2647
      %v2649 = vpop.f32.mrf.mxu0
      %v2650 = vadd.f32 0.0, %v2649
      %2651 = vmatmul.bf16.gmra.mxu0 %v1464
      %v2652 = vpop.f32.mrf.mxu0
      %v2653 = vadd.f32 0.0, %v2652
      %v2654 = vpop.f32.mrf.mxu0
      %v2655 = vadd.f32 0.0, %v2654
      %2656 = vmatmul.bf16.gmra.mxu0 %v1482
      %v2657 = vpop.f32.mrf.mxu0
      %v2658 = vadd.f32 0.0, %v2657
      %v2659 = vpop.f32.mrf.mxu0
      %v2660 = vadd.f32 0.0, %v2659
      %2661 = vmatmul.bf16.gmra.mxu0 %v1500
      %v2662 = vpop.f32.mrf.mxu0
      %v2663 = vadd.f32 0.0, %v2662
      %v2664 = vpop.f32.mrf.mxu0
      %v2665 = vadd.f32 0.0, %v2664
      %2666 = vdwg.mxu0
      %2667 = vmatpush.bf16.msra.mxu0 %v2325
      %2668 = vmatpush.bf16.msra.mxu0 %v2324
      %2669 = vmatpush.bf16.msra.mxu0 %v2323
      %2670 = vmatpush.bf16.msra.mxu0 %v2322
      %2671 = vmatpush.bf16.msra.mxu0 %v2321
      %2672 = vmatpush.bf16.msra.mxu0 %v2320
      %2673 = vmatpush.bf16.msra.mxu0 %v2319
      %2674 = vmatpush.bf16.msra.mxu0 %v2318
      %2675 = vmatmul.bf16.gmra.mxu0 %v1303
      %v2676 = vpop.f32.mrf.mxu0
      %v2677 = vadd.f32 %v2608, %v2676
      %v2678 = vpop.f32.mrf.mxu0
      %v2679 = vadd.f32 %v2610, %v2678
      %2680 = vmatmul.bf16.gmra.mxu0 %v1321
      %v2681 = vpop.f32.mrf.mxu0
      %v2682 = vadd.f32 %v2613, %v2681
      %v2683 = vpop.f32.mrf.mxu0
      %v2684 = vadd.f32 %v2615, %v2683
      %2685 = vmatmul.bf16.gmra.mxu0 %v1339
      %v2686 = vpop.f32.mrf.mxu0
      %v2687 = vadd.f32 %v2618, %v2686
      %v2688 = vpop.f32.mrf.mxu0
      %v2689 = vadd.f32 %v2620, %v2688
      %2690 = vmatmul.bf16.gmra.mxu0 %v1357
      %v2691 = vpop.f32.mrf.mxu0
      %v2692 = vadd.f32 %v2623, %v2691
      %v2693 = vpop.f32.mrf.mxu0
      %v2694 = vadd.f32 %v2625, %v2693
      %2695 = vmatmul.bf16.gmra.mxu0 %v1375
      %v2696 = vpop.f32.mrf.mxu0
      %v2697 = vadd.f32 %v2628, %v2696
      %v2698 = vpop.f32.mrf.mxu0
      %v2699 = vadd.f32 %v2630, %v2698
      %2700 = vmatmul.bf16.gmra.mxu0 %v1393
      %v2701 = vpop.f32.mrf.mxu0
      %v2702 = vadd.f32 %v2633, %v2701
      %v2703 = vpop.f32.mrf.mxu0
      %v2704 = vadd.f32 %v2635, %v2703
      %2705 = vmatmul.bf16.gmra.mxu0 %v1411
      %v2706 = vpop.f32.mrf.mxu0
      %v2707 = vadd.f32 %v2638, %v2706
      %v2708 = vpop.f32.mrf.mxu0
      %v2709 = vadd.f32 %v2640, %v2708
      %2710 = vmatmul.bf16.gmra.mxu0 %v1429
      %v2711 = vpop.f32.mrf.mxu0
      %v2712 = vadd.f32 %v2643, %v2711
      %v2713 = vpop.f32.mrf.mxu0
      %v2714 = vadd.f32 %v2645, %v2713
      %2715 = vmatmul.bf16.gmra.mxu0 %v1447
      %v2716 = vpop.f32.mrf.mxu0
      %v2717 = vadd.f32 %v2648, %v2716
      %v2718 = vpop.f32.mrf.mxu0
      %v2719 = vadd.f32 %v2650, %v2718
      %2720 = vmatmul.bf16.gmra.mxu0 %v1465
      %v2721 = vpop.f32.mrf.mxu0
      %v2722 = vadd.f32 %v2653, %v2721
      %v2723 = vpop.f32.mrf.mxu0
      %v2724 = vadd.f32 %v2655, %v2723
      %2725 = vmatmul.bf16.gmra.mxu0 %v1483
      %v2726 = vpop.f32.mrf.mxu0
      %v2727 = vadd.f32 %v2658, %v2726
      %v2728 = vpop.f32.mrf.mxu0
      %v2729 = vadd.f32 %v2660, %v2728
      %2730 = vmatmul.bf16.gmra.mxu0 %v1501
      %v2731 = vpop.f32.mrf.mxu0
      %v2732 = vadd.f32 %v2663, %v2731
      %v2733 = vpop.f32.mrf.mxu0
      %v2734 = vadd.f32 %v2665, %v2733
      %2735 = vdwg.mxu0
      %2736 = vmatpush.bf16.msra.mxu0 %v2333
      %2737 = vmatpush.bf16.msra.mxu0 %v2332
      %2738 = vmatpush.bf16.msra.mxu0 %v2331
      %2739 = vmatpush.bf16.msra.mxu0 %v2330
      %2740 = vmatpush.bf16.msra.mxu0 %v2329
      %2741 = vmatpush.bf16.msra.mxu0 %v2328
      %2742 = vmatpush.bf16.msra.mxu0 %v2327
      %2743 = vmatpush.bf16.msra.mxu0 %v2326
      %2744 = vmatmul.bf16.gmra.mxu0 %v1304
      %v2745 = vpop.f32.mrf.mxu0
      %v2746 = vadd.f32 %v2677, %v2745
      %v2747 = vpop.f32.mrf.mxu0
      %v2748 = vadd.f32 %v2679, %v2747
      %2749 = vmatmul.bf16.gmra.mxu0 %v1322
      %v2750 = vpop.f32.mrf.mxu0
      %v2751 = vadd.f32 %v2682, %v2750
      %v2752 = vpop.f32.mrf.mxu0
      %v2753 = vadd.f32 %v2684, %v2752
      %2754 = vmatmul.bf16.gmra.mxu0 %v1340
      %v2755 = vpop.f32.mrf.mxu0
      %v2756 = vadd.f32 %v2687, %v2755
      %v2757 = vpop.f32.mrf.mxu0
      %v2758 = vadd.f32 %v2689, %v2757
      %2759 = vmatmul.bf16.gmra.mxu0 %v1358
      %v2760 = vpop.f32.mrf.mxu0
      %v2761 = vadd.f32 %v2692, %v2760
      %v2762 = vpop.f32.mrf.mxu0
      %v2763 = vadd.f32 %v2694, %v2762
      %2764 = vmatmul.bf16.gmra.mxu0 %v1376
      %v2765 = vpop.f32.mrf.mxu0
      %v2766 = vadd.f32 %v2697, %v2765
      %v2767 = vpop.f32.mrf.mxu0
      %v2768 = vadd.f32 %v2699, %v2767
      %2769 = vmatmul.bf16.gmra.mxu0 %v1394
      %v2770 = vpop.f32.mrf.mxu0
      %v2771 = vadd.f32 %v2702, %v2770
      %v2772 = vpop.f32.mrf.mxu0
      %v2773 = vadd.f32 %v2704, %v2772
      %2774 = vmatmul.bf16.gmra.mxu0 %v1412
      %v2775 = vpop.f32.mrf.mxu0
      %v2776 = vadd.f32 %v2707, %v2775
      %v2777 = vpop.f32.mrf.mxu0
      %v2778 = vadd.f32 %v2709, %v2777
      %2779 = vmatmul.bf16.gmra.mxu0 %v1430
      %v2780 = vpop.f32.mrf.mxu0
      %v2781 = vadd.f32 %v2712, %v2780
      %v2782 = vpop.f32.mrf.mxu0
      %v2783 = vadd.f32 %v2714, %v2782
      %2784 = vmatmul.bf16.gmra.mxu0 %v1448
      %v2785 = vpop.f32.mrf.mxu0
      %v2786 = vadd.f32 %v2717, %v2785
      %v2787 = vpop.f32.mrf.mxu0
      %v2788 = vadd.f32 %v2719, %v2787
      %2789 = vmatmul.bf16.gmra.mxu0 %v1466
      %v2790 = vpop.f32.mrf.mxu0
      %v2791 = vadd.f32 %v2722, %v2790
      %v2792 = vpop.f32.mrf.mxu0
      %v2793 = vadd.f32 %v2724, %v2792
      %2794 = vmatmul.bf16.gmra.mxu0 %v1484
      %v2795 = vpop.f32.mrf.mxu0
      %v2796 = vadd.f32 %v2727, %v2795
      %v2797 = vpop.f32.mrf.mxu0
      %v2798 = vadd.f32 %v2729, %v2797
      %2799 = vmatmul.bf16.gmra.mxu0 %v1502
      %v2800 = vpop.f32.mrf.mxu0
      %v2801 = vadd.f32 %v2732, %v2800
      %v2802 = vpop.f32.mrf.mxu0
      %v2803 = vadd.f32 %v2734, %v2802
      %2804 = vdwg.mxu0
      %2805 = vmatpush.bf16.msra.mxu0 %v2341
      %2806 = vmatpush.bf16.msra.mxu0 %v2340
      %2807 = vmatpush.bf16.msra.mxu0 %v2339
      %2808 = vmatpush.bf16.msra.mxu0 %v2338
      %2809 = vmatpush.bf16.msra.mxu0 %v2337
      %2810 = vmatpush.bf16.msra.mxu0 %v2336
      %2811 = vmatpush.bf16.msra.mxu0 %v2335
      %2812 = vmatpush.bf16.msra.mxu0 %v2334
      %2813 = vmatmul.bf16.gmra.mxu0 %v1305
      %v2814 = vpop.f32.mrf.mxu0
      %v2815 = vadd.f32 %v2746, %v2814
      %v2816 = vpop.f32.mrf.mxu0
      %v2817 = vadd.f32 %v2748, %v2816
      %2818 = vmatmul.bf16.gmra.mxu0 %v1323
      %v2819 = vpop.f32.mrf.mxu0
      %v2820 = vadd.f32 %v2751, %v2819
      %v2821 = vpop.f32.mrf.mxu0
      %v2822 = vadd.f32 %v2753, %v2821
      %2823 = vmatmul.bf16.gmra.mxu0 %v1341
      %v2824 = vpop.f32.mrf.mxu0
      %v2825 = vadd.f32 %v2756, %v2824
      %v2826 = vpop.f32.mrf.mxu0
      %v2827 = vadd.f32 %v2758, %v2826
      %2828 = vmatmul.bf16.gmra.mxu0 %v1359
      %v2829 = vpop.f32.mrf.mxu0
      %v2830 = vadd.f32 %v2761, %v2829
      %v2831 = vpop.f32.mrf.mxu0
      %v2832 = vadd.f32 %v2763, %v2831
      %2833 = vmatmul.bf16.gmra.mxu0 %v1377
      %v2834 = vpop.f32.mrf.mxu0
      %v2835 = vadd.f32 %v2766, %v2834
      %v2836 = vpop.f32.mrf.mxu0
      %v2837 = vadd.f32 %v2768, %v2836
      %2838 = vmatmul.bf16.gmra.mxu0 %v1395
      %v2839 = vpop.f32.mrf.mxu0
      %v2840 = vadd.f32 %v2771, %v2839
      %v2841 = vpop.f32.mrf.mxu0
      %v2842 = vadd.f32 %v2773, %v2841
      %2843 = vmatmul.bf16.gmra.mxu0 %v1413
      %v2844 = vpop.f32.mrf.mxu0
      %v2845 = vadd.f32 %v2776, %v2844
      %v2846 = vpop.f32.mrf.mxu0
      %v2847 = vadd.f32 %v2778, %v2846
      %2848 = vmatmul.bf16.gmra.mxu0 %v1431
      %v2849 = vpop.f32.mrf.mxu0
      %v2850 = vadd.f32 %v2781, %v2849
      %v2851 = vpop.f32.mrf.mxu0
      %v2852 = vadd.f32 %v2783, %v2851
      %2853 = vmatmul.bf16.gmra.mxu0 %v1449
      %v2854 = vpop.f32.mrf.mxu0
      %v2855 = vadd.f32 %v2786, %v2854
      %v2856 = vpop.f32.mrf.mxu0
      %v2857 = vadd.f32 %v2788, %v2856
      %2858 = vmatmul.bf16.gmra.mxu0 %v1467
      %v2859 = vpop.f32.mrf.mxu0
      %v2860 = vadd.f32 %v2791, %v2859
      %v2861 = vpop.f32.mrf.mxu0
      %v2862 = vadd.f32 %v2793, %v2861
      %2863 = vmatmul.bf16.gmra.mxu0 %v1485
      %v2864 = vpop.f32.mrf.mxu0
      %v2865 = vadd.f32 %v2796, %v2864
      %v2866 = vpop.f32.mrf.mxu0
      %v2867 = vadd.f32 %v2798, %v2866
      %2868 = vmatmul.bf16.gmra.mxu0 %v1503
      %v2869 = vpop.f32.mrf.mxu0
      %v2870 = vadd.f32 %v2801, %v2869
      %v2871 = vpop.f32.mrf.mxu0
      %v2872 = vadd.f32 %v2803, %v2871
      %2873 = vdwg.mxu0
      %2874 = vmatpush.bf16.msra.mxu0 %v2349
      %2875 = vmatpush.bf16.msra.mxu0 %v2348
      %2876 = vmatpush.bf16.msra.mxu0 %v2347
      %2877 = vmatpush.bf16.msra.mxu0 %v2346
      %2878 = vmatpush.bf16.msra.mxu0 %v2345
      %2879 = vmatpush.bf16.msra.mxu0 %v2344
      %2880 = vmatpush.bf16.msra.mxu0 %v2343
      %2881 = vmatpush.bf16.msra.mxu0 %v2342
      %2882 = vmatmul.bf16.gmra.mxu0 %v1306
      %v2883 = vpop.f32.mrf.mxu0
      %v2884 = vadd.f32 %v2815, %v2883
      %v2885 = vpop.f32.mrf.mxu0
      %v2886 = vadd.f32 %v2817, %v2885
      %2887 = vmatmul.bf16.gmra.mxu0 %v1324
      %v2888 = vpop.f32.mrf.mxu0
      %v2889 = vadd.f32 %v2820, %v2888
      %v2890 = vpop.f32.mrf.mxu0
      %v2891 = vadd.f32 %v2822, %v2890
      %2892 = vmatmul.bf16.gmra.mxu0 %v1342
      %v2893 = vpop.f32.mrf.mxu0
      %v2894 = vadd.f32 %v2825, %v2893
      %v2895 = vpop.f32.mrf.mxu0
      %v2896 = vadd.f32 %v2827, %v2895
      %2897 = vmatmul.bf16.gmra.mxu0 %v1360
      %v2898 = vpop.f32.mrf.mxu0
      %v2899 = vadd.f32 %v2830, %v2898
      %v2900 = vpop.f32.mrf.mxu0
      %v2901 = vadd.f32 %v2832, %v2900
      %2902 = vmatmul.bf16.gmra.mxu0 %v1378
      %v2903 = vpop.f32.mrf.mxu0
      %v2904 = vadd.f32 %v2835, %v2903
      %v2905 = vpop.f32.mrf.mxu0
      %v2906 = vadd.f32 %v2837, %v2905
      %2907 = vmatmul.bf16.gmra.mxu0 %v1396
      %v2908 = vpop.f32.mrf.mxu0
      %v2909 = vadd.f32 %v2840, %v2908
      %v2910 = vpop.f32.mrf.mxu0
      %v2911 = vadd.f32 %v2842, %v2910
      %2912 = vmatmul.bf16.gmra.mxu0 %v1414
      %v2913 = vpop.f32.mrf.mxu0
      %v2914 = vadd.f32 %v2845, %v2913
      %v2915 = vpop.f32.mrf.mxu0
      %v2916 = vadd.f32 %v2847, %v2915
      %2917 = vmatmul.bf16.gmra.mxu0 %v1432
      %v2918 = vpop.f32.mrf.mxu0
      %v2919 = vadd.f32 %v2850, %v2918
      %v2920 = vpop.f32.mrf.mxu0
      %v2921 = vadd.f32 %v2852, %v2920
      %2922 = vmatmul.bf16.gmra.mxu0 %v1450
      %v2923 = vpop.f32.mrf.mxu0
      %v2924 = vadd.f32 %v2855, %v2923
      %v2925 = vpop.f32.mrf.mxu0
      %v2926 = vadd.f32 %v2857, %v2925
      %2927 = vmatmul.bf16.gmra.mxu0 %v1468
      %v2928 = vpop.f32.mrf.mxu0
      %v2929 = vadd.f32 %v2860, %v2928
      %v2930 = vpop.f32.mrf.mxu0
      %v2931 = vadd.f32 %v2862, %v2930
      %2932 = vmatmul.bf16.gmra.mxu0 %v1486
      %v2933 = vpop.f32.mrf.mxu0
      %v2934 = vadd.f32 %v2865, %v2933
      %v2935 = vpop.f32.mrf.mxu0
      %v2936 = vadd.f32 %v2867, %v2935
      %2937 = vmatmul.bf16.gmra.mxu0 %v1504
      %v2938 = vpop.f32.mrf.mxu0
      %v2939 = vadd.f32 %v2870, %v2938
      %v2940 = vpop.f32.mrf.mxu0
      %v2941 = vadd.f32 %v2872, %v2940
      %2942 = vdwg.mxu0
      %2943 = vmatpush.bf16.msra.mxu0 %v2357
      %2944 = vmatpush.bf16.msra.mxu0 %v2356
      %2945 = vmatpush.bf16.msra.mxu0 %v2355
      %2946 = vmatpush.bf16.msra.mxu0 %v2354
      %2947 = vmatpush.bf16.msra.mxu0 %v2353
      %2948 = vmatpush.bf16.msra.mxu0 %v2352
      %2949 = vmatpush.bf16.msra.mxu0 %v2351
      %2950 = vmatpush.bf16.msra.mxu0 %v2350
      %2951 = vmatmul.bf16.gmra.mxu0 %v1307
      %v2952 = vpop.f32.mrf.mxu0
      %v2953 = vadd.f32 %v2884, %v2952
      %v2954 = vpop.f32.mrf.mxu0
      %v2955 = vadd.f32 %v2886, %v2954
      %2956 = vmatmul.bf16.gmra.mxu0 %v1325
      %v2957 = vpop.f32.mrf.mxu0
      %v2958 = vadd.f32 %v2889, %v2957
      %v2959 = vpop.f32.mrf.mxu0
      %v2960 = vadd.f32 %v2891, %v2959
      %2961 = vmatmul.bf16.gmra.mxu0 %v1343
      %v2962 = vpop.f32.mrf.mxu0
      %v2963 = vadd.f32 %v2894, %v2962
      %v2964 = vpop.f32.mrf.mxu0
      %v2965 = vadd.f32 %v2896, %v2964
      %2966 = vmatmul.bf16.gmra.mxu0 %v1361
      %v2967 = vpop.f32.mrf.mxu0
      %v2968 = vadd.f32 %v2899, %v2967
      %v2969 = vpop.f32.mrf.mxu0
      %v2970 = vadd.f32 %v2901, %v2969
      %2971 = vmatmul.bf16.gmra.mxu0 %v1379
      %v2972 = vpop.f32.mrf.mxu0
      %v2973 = vadd.f32 %v2904, %v2972
      %v2974 = vpop.f32.mrf.mxu0
      %v2975 = vadd.f32 %v2906, %v2974
      %2976 = vmatmul.bf16.gmra.mxu0 %v1397
      %v2977 = vpop.f32.mrf.mxu0
      %v2978 = vadd.f32 %v2909, %v2977
      %v2979 = vpop.f32.mrf.mxu0
      %v2980 = vadd.f32 %v2911, %v2979
      %2981 = vmatmul.bf16.gmra.mxu0 %v1415
      %v2982 = vpop.f32.mrf.mxu0
      %v2983 = vadd.f32 %v2914, %v2982
      %v2984 = vpop.f32.mrf.mxu0
      %v2985 = vadd.f32 %v2916, %v2984
      %2986 = vmatmul.bf16.gmra.mxu0 %v1433
      %v2987 = vpop.f32.mrf.mxu0
      %v2988 = vadd.f32 %v2919, %v2987
      %v2989 = vpop.f32.mrf.mxu0
      %v2990 = vadd.f32 %v2921, %v2989
      %2991 = vmatmul.bf16.gmra.mxu0 %v1451
      %v2992 = vpop.f32.mrf.mxu0
      %v2993 = vadd.f32 %v2924, %v2992
      %v2994 = vpop.f32.mrf.mxu0
      %v2995 = vadd.f32 %v2926, %v2994
      %2996 = vmatmul.bf16.gmra.mxu0 %v1469
      %v2997 = vpop.f32.mrf.mxu0
      %v2998 = vadd.f32 %v2929, %v2997
      %v2999 = vpop.f32.mrf.mxu0
      %v3000 = vadd.f32 %v2931, %v2999
      %3001 = vmatmul.bf16.gmra.mxu0 %v1487
      %v3002 = vpop.f32.mrf.mxu0
      %v3003 = vadd.f32 %v2934, %v3002
      %v3004 = vpop.f32.mrf.mxu0
      %v3005 = vadd.f32 %v2936, %v3004
      %3006 = vmatmul.bf16.gmra.mxu0 %v1505
      %v3007 = vpop.f32.mrf.mxu0
      %v3008 = vadd.f32 %v2939, %v3007
      %v3009 = vpop.f32.mrf.mxu0
      %v3010 = vadd.f32 %v2941, %v3009
      %3011 = vdwg.mxu0
      %3012 = vmatpush.bf16.msra.mxu0 %v2365
      %3013 = vmatpush.bf16.msra.mxu0 %v2364
      %3014 = vmatpush.bf16.msra.mxu0 %v2363
      %3015 = vmatpush.bf16.msra.mxu0 %v2362
      %3016 = vmatpush.bf16.msra.mxu0 %v2361
      %3017 = vmatpush.bf16.msra.mxu0 %v2360
      %3018 = vmatpush.bf16.msra.mxu0 %v2359
      %3019 = vmatpush.bf16.msra.mxu0 %v2358
      %3020 = vmatmul.bf16.gmra.mxu0 %v1308
      %v3021 = vpop.f32.mrf.mxu0
      %v3022 = vadd.f32 %v2953, %v3021
      %v3023 = vpop.f32.mrf.mxu0
      %v3024 = vadd.f32 %v2955, %v3023
      %3025 = vmatmul.bf16.gmra.mxu0 %v1326
      %v3026 = vpop.f32.mrf.mxu0
      %v3027 = vadd.f32 %v2958, %v3026
      %v3028 = vpop.f32.mrf.mxu0
      %v3029 = vadd.f32 %v2960, %v3028
      %3030 = vmatmul.bf16.gmra.mxu0 %v1344
      %v3031 = vpop.f32.mrf.mxu0
      %v3032 = vadd.f32 %v2963, %v3031
      %v3033 = vpop.f32.mrf.mxu0
      %v3034 = vadd.f32 %v2965, %v3033
      %3035 = vmatmul.bf16.gmra.mxu0 %v1362
      %v3036 = vpop.f32.mrf.mxu0
      %v3037 = vadd.f32 %v2968, %v3036
      %v3038 = vpop.f32.mrf.mxu0
      %v3039 = vadd.f32 %v2970, %v3038
      %3040 = vmatmul.bf16.gmra.mxu0 %v1380
      %v3041 = vpop.f32.mrf.mxu0
      %v3042 = vadd.f32 %v2973, %v3041
      %v3043 = vpop.f32.mrf.mxu0
      %v3044 = vadd.f32 %v2975, %v3043
      %3045 = vmatmul.bf16.gmra.mxu0 %v1398
      %v3046 = vpop.f32.mrf.mxu0
      %v3047 = vadd.f32 %v2978, %v3046
      %v3048 = vpop.f32.mrf.mxu0
      %v3049 = vadd.f32 %v2980, %v3048
      %3050 = vmatmul.bf16.gmra.mxu0 %v1416
      %v3051 = vpop.f32.mrf.mxu0
      %v3052 = vadd.f32 %v2983, %v3051
      %v3053 = vpop.f32.mrf.mxu0
      %v3054 = vadd.f32 %v2985, %v3053
      %3055 = vmatmul.bf16.gmra.mxu0 %v1434
      %v3056 = vpop.f32.mrf.mxu0
      %v3057 = vadd.f32 %v2988, %v3056
      %v3058 = vpop.f32.mrf.mxu0
      %v3059 = vadd.f32 %v2990, %v3058
      %3060 = vmatmul.bf16.gmra.mxu0 %v1452
      %v3061 = vpop.f32.mrf.mxu0
      %v3062 = vadd.f32 %v2993, %v3061
      %v3063 = vpop.f32.mrf.mxu0
      %v3064 = vadd.f32 %v2995, %v3063
      %3065 = vmatmul.bf16.gmra.mxu0 %v1470
      %v3066 = vpop.f32.mrf.mxu0
      %v3067 = vadd.f32 %v2998, %v3066
      %v3068 = vpop.f32.mrf.mxu0
      %v3069 = vadd.f32 %v3000, %v3068
      %3070 = vmatmul.bf16.gmra.mxu0 %v1488
      %v3071 = vpop.f32.mrf.mxu0
      %v3072 = vadd.f32 %v3003, %v3071
      %v3073 = vpop.f32.mrf.mxu0
      %v3074 = vadd.f32 %v3005, %v3073
      %3075 = vmatmul.bf16.gmra.mxu0 %v1506
      %v3076 = vpop.f32.mrf.mxu0
      %v3077 = vadd.f32 %v3008, %v3076
      %v3078 = vpop.f32.mrf.mxu0
      %v3079 = vadd.f32 %v3010, %v3078
      %3080 = vdwg.mxu0
      %3081 = vmatpush.bf16.msra.mxu0 %v2373
      %3082 = vmatpush.bf16.msra.mxu0 %v2372
      %3083 = vmatpush.bf16.msra.mxu0 %v2371
      %3084 = vmatpush.bf16.msra.mxu0 %v2370
      %3085 = vmatpush.bf16.msra.mxu0 %v2369
      %3086 = vmatpush.bf16.msra.mxu0 %v2368
      %3087 = vmatpush.bf16.msra.mxu0 %v2367
      %3088 = vmatpush.bf16.msra.mxu0 %v2366
      %3089 = vmatmul.bf16.gmra.mxu0 %v1309
      %v3090 = vpop.f32.mrf.mxu0
      %v3091 = vadd.f32 %v3022, %v3090
      %v3092 = vpop.f32.mrf.mxu0
      %v3093 = vadd.f32 %v3024, %v3092
      %3094 = vmatmul.bf16.gmra.mxu0 %v1327
      %v3095 = vpop.f32.mrf.mxu0
      %v3096 = vadd.f32 %v3027, %v3095
      %v3097 = vpop.f32.mrf.mxu0
      %v3098 = vadd.f32 %v3029, %v3097
      %3099 = vmatmul.bf16.gmra.mxu0 %v1345
      %v3100 = vpop.f32.mrf.mxu0
      %v3101 = vadd.f32 %v3032, %v3100
      %v3102 = vpop.f32.mrf.mxu0
      %v3103 = vadd.f32 %v3034, %v3102
      %3104 = vmatmul.bf16.gmra.mxu0 %v1363
      %v3105 = vpop.f32.mrf.mxu0
      %v3106 = vadd.f32 %v3037, %v3105
      %v3107 = vpop.f32.mrf.mxu0
      %v3108 = vadd.f32 %v3039, %v3107
      %3109 = vmatmul.bf16.gmra.mxu0 %v1381
      %v3110 = vpop.f32.mrf.mxu0
      %v3111 = vadd.f32 %v3042, %v3110
      %v3112 = vpop.f32.mrf.mxu0
      %v3113 = vadd.f32 %v3044, %v3112
      %3114 = vmatmul.bf16.gmra.mxu0 %v1399
      %v3115 = vpop.f32.mrf.mxu0
      %v3116 = vadd.f32 %v3047, %v3115
      %v3117 = vpop.f32.mrf.mxu0
      %v3118 = vadd.f32 %v3049, %v3117
      %3119 = vmatmul.bf16.gmra.mxu0 %v1417
      %v3120 = vpop.f32.mrf.mxu0
      %v3121 = vadd.f32 %v3052, %v3120
      %v3122 = vpop.f32.mrf.mxu0
      %v3123 = vadd.f32 %v3054, %v3122
      %3124 = vmatmul.bf16.gmra.mxu0 %v1435
      %v3125 = vpop.f32.mrf.mxu0
      %v3126 = vadd.f32 %v3057, %v3125
      %v3127 = vpop.f32.mrf.mxu0
      %v3128 = vadd.f32 %v3059, %v3127
      %3129 = vmatmul.bf16.gmra.mxu0 %v1453
      %v3130 = vpop.f32.mrf.mxu0
      %v3131 = vadd.f32 %v3062, %v3130
      %v3132 = vpop.f32.mrf.mxu0
      %v3133 = vadd.f32 %v3064, %v3132
      %3134 = vmatmul.bf16.gmra.mxu0 %v1471
      %v3135 = vpop.f32.mrf.mxu0
      %v3136 = vadd.f32 %v3067, %v3135
      %v3137 = vpop.f32.mrf.mxu0
      %v3138 = vadd.f32 %v3069, %v3137
      %3139 = vmatmul.bf16.gmra.mxu0 %v1489
      %v3140 = vpop.f32.mrf.mxu0
      %v3141 = vadd.f32 %v3072, %v3140
      %v3142 = vpop.f32.mrf.mxu0
      %v3143 = vadd.f32 %v3074, %v3142
      %3144 = vmatmul.bf16.gmra.mxu0 %v1507
      %v3145 = vpop.f32.mrf.mxu0
      %v3146 = vadd.f32 %v3077, %v3145
      %v3147 = vpop.f32.mrf.mxu0
      %v3148 = vadd.f32 %v3079, %v3147
      %3149 = vdwg.mxu0
      %3150 = vmatpush.bf16.msra.mxu0 %v2381
      %3151 = vmatpush.bf16.msra.mxu0 %v2380
      %3152 = vmatpush.bf16.msra.mxu0 %v2379
      %3153 = vmatpush.bf16.msra.mxu0 %v2378
      %3154 = vmatpush.bf16.msra.mxu0 %v2377
      %3155 = vmatpush.bf16.msra.mxu0 %v2376
      %3156 = vmatpush.bf16.msra.mxu0 %v2375
      %3157 = vmatpush.bf16.msra.mxu0 %v2374
      %3158 = vmatmul.bf16.gmra.mxu0 %v1310
      %v3159 = vpop.f32.mrf.mxu0
      %v3160 = vadd.f32 %v3091, %v3159
      %v3161 = vpop.f32.mrf.mxu0
      %v3162 = vadd.f32 %v3093, %v3161
      %3163 = vmatmul.bf16.gmra.mxu0 %v1328
      %v3164 = vpop.f32.mrf.mxu0
      %v3165 = vadd.f32 %v3096, %v3164
      %v3166 = vpop.f32.mrf.mxu0
      %v3167 = vadd.f32 %v3098, %v3166
      %3168 = vmatmul.bf16.gmra.mxu0 %v1346
      %v3169 = vpop.f32.mrf.mxu0
      %v3170 = vadd.f32 %v3101, %v3169
      %v3171 = vpop.f32.mrf.mxu0
      %v3172 = vadd.f32 %v3103, %v3171
      %3173 = vmatmul.bf16.gmra.mxu0 %v1364
      %v3174 = vpop.f32.mrf.mxu0
      %v3175 = vadd.f32 %v3106, %v3174
      %v3176 = vpop.f32.mrf.mxu0
      %v3177 = vadd.f32 %v3108, %v3176
      %3178 = vmatmul.bf16.gmra.mxu0 %v1382
      %v3179 = vpop.f32.mrf.mxu0
      %v3180 = vadd.f32 %v3111, %v3179
      %v3181 = vpop.f32.mrf.mxu0
      %v3182 = vadd.f32 %v3113, %v3181
      %3183 = vmatmul.bf16.gmra.mxu0 %v1400
      %v3184 = vpop.f32.mrf.mxu0
      %v3185 = vadd.f32 %v3116, %v3184
      %v3186 = vpop.f32.mrf.mxu0
      %v3187 = vadd.f32 %v3118, %v3186
      %3188 = vmatmul.bf16.gmra.mxu0 %v1418
      %v3189 = vpop.f32.mrf.mxu0
      %v3190 = vadd.f32 %v3121, %v3189
      %v3191 = vpop.f32.mrf.mxu0
      %v3192 = vadd.f32 %v3123, %v3191
      %3193 = vmatmul.bf16.gmra.mxu0 %v1436
      %v3194 = vpop.f32.mrf.mxu0
      %v3195 = vadd.f32 %v3126, %v3194
      %v3196 = vpop.f32.mrf.mxu0
      %v3197 = vadd.f32 %v3128, %v3196
      %3198 = vmatmul.bf16.gmra.mxu0 %v1454
      %v3199 = vpop.f32.mrf.mxu0
      %v3200 = vadd.f32 %v3131, %v3199
      %v3201 = vpop.f32.mrf.mxu0
      %v3202 = vadd.f32 %v3133, %v3201
      %3203 = vmatmul.bf16.gmra.mxu0 %v1472
      %v3204 = vpop.f32.mrf.mxu0
      %v3205 = vadd.f32 %v3136, %v3204
      %v3206 = vpop.f32.mrf.mxu0
      %v3207 = vadd.f32 %v3138, %v3206
      %3208 = vmatmul.bf16.gmra.mxu0 %v1490
      %v3209 = vpop.f32.mrf.mxu0
      %v3210 = vadd.f32 %v3141, %v3209
      %v3211 = vpop.f32.mrf.mxu0
      %v3212 = vadd.f32 %v3143, %v3211
      %3213 = vmatmul.bf16.gmra.mxu0 %v1508
      %v3214 = vpop.f32.mrf.mxu0
      %v3215 = vadd.f32 %v3146, %v3214
      %v3216 = vpop.f32.mrf.mxu0
      %v3217 = vadd.f32 %v3148, %v3216
      %3218 = vdwg.mxu0
      %3219 = vmatpush.bf16.msra.mxu0 %v2389
      %3220 = vmatpush.bf16.msra.mxu0 %v2388
      %3221 = vmatpush.bf16.msra.mxu0 %v2387
      %3222 = vmatpush.bf16.msra.mxu0 %v2386
      %3223 = vmatpush.bf16.msra.mxu0 %v2385
      %3224 = vmatpush.bf16.msra.mxu0 %v2384
      %3225 = vmatpush.bf16.msra.mxu0 %v2383
      %3226 = vmatpush.bf16.msra.mxu0 %v2382
      %3227 = vmatmul.bf16.gmra.mxu0 %v1311
      %v3228 = vpop.f32.mrf.mxu0
      %v3229 = vadd.f32 %v3160, %v3228
      %v3230 = vpop.f32.mrf.mxu0
      %v3231 = vadd.f32 %v3162, %v3230
      %3232 = vmatmul.bf16.gmra.mxu0 %v1329
      %v3233 = vpop.f32.mrf.mxu0
      %v3234 = vadd.f32 %v3165, %v3233
      %v3235 = vpop.f32.mrf.mxu0
      %v3236 = vadd.f32 %v3167, %v3235
      %3237 = vmatmul.bf16.gmra.mxu0 %v1347
      %v3238 = vpop.f32.mrf.mxu0
      %v3239 = vadd.f32 %v3170, %v3238
      %v3240 = vpop.f32.mrf.mxu0
      %v3241 = vadd.f32 %v3172, %v3240
      %3242 = vmatmul.bf16.gmra.mxu0 %v1365
      %v3243 = vpop.f32.mrf.mxu0
      %v3244 = vadd.f32 %v3175, %v3243
      %v3245 = vpop.f32.mrf.mxu0
      %v3246 = vadd.f32 %v3177, %v3245
      %3247 = vmatmul.bf16.gmra.mxu0 %v1383
      %v3248 = vpop.f32.mrf.mxu0
      %v3249 = vadd.f32 %v3180, %v3248
      %v3250 = vpop.f32.mrf.mxu0
      %v3251 = vadd.f32 %v3182, %v3250
      %3252 = vmatmul.bf16.gmra.mxu0 %v1401
      %v3253 = vpop.f32.mrf.mxu0
      %v3254 = vadd.f32 %v3185, %v3253
      %v3255 = vpop.f32.mrf.mxu0
      %v3256 = vadd.f32 %v3187, %v3255
      %3257 = vmatmul.bf16.gmra.mxu0 %v1419
      %v3258 = vpop.f32.mrf.mxu0
      %v3259 = vadd.f32 %v3190, %v3258
      %v3260 = vpop.f32.mrf.mxu0
      %v3261 = vadd.f32 %v3192, %v3260
      %3262 = vmatmul.bf16.gmra.mxu0 %v1437
      %v3263 = vpop.f32.mrf.mxu0
      %v3264 = vadd.f32 %v3195, %v3263
      %v3265 = vpop.f32.mrf.mxu0
      %v3266 = vadd.f32 %v3197, %v3265
      %3267 = vmatmul.bf16.gmra.mxu0 %v1455
      %v3268 = vpop.f32.mrf.mxu0
      %v3269 = vadd.f32 %v3200, %v3268
      %v3270 = vpop.f32.mrf.mxu0
      %v3271 = vadd.f32 %v3202, %v3270
      %3272 = vmatmul.bf16.gmra.mxu0 %v1473
      %v3273 = vpop.f32.mrf.mxu0
      %v3274 = vadd.f32 %v3205, %v3273
      %v3275 = vpop.f32.mrf.mxu0
      %v3276 = vadd.f32 %v3207, %v3275
      %3277 = vmatmul.bf16.gmra.mxu0 %v1491
      %v3278 = vpop.f32.mrf.mxu0
      %v3279 = vadd.f32 %v3210, %v3278
      %v3280 = vpop.f32.mrf.mxu0
      %v3281 = vadd.f32 %v3212, %v3280
      %3282 = vmatmul.bf16.gmra.mxu0 %v1509
      %v3283 = vpop.f32.mrf.mxu0
      %v3284 = vadd.f32 %v3215, %v3283
      %v3285 = vpop.f32.mrf.mxu0
      %v3286 = vadd.f32 %v3217, %v3285
      %3287 = vdwg.mxu0
      %3288 = vmatpush.bf16.msra.mxu0 %v2397
      %3289 = vmatpush.bf16.msra.mxu0 %v2396
      %3290 = vmatpush.bf16.msra.mxu0 %v2395
      %3291 = vmatpush.bf16.msra.mxu0 %v2394
      %3292 = vmatpush.bf16.msra.mxu0 %v2393
      %3293 = vmatpush.bf16.msra.mxu0 %v2392
      %3294 = vmatpush.bf16.msra.mxu0 %v2391
      %3295 = vmatpush.bf16.msra.mxu0 %v2390
      %3296 = vmatmul.bf16.gmra.mxu0 %v1312
      %v3297 = vpop.f32.mrf.mxu0
      %v3298 = vadd.f32 %v3229, %v3297
      %v3299 = vpop.f32.mrf.mxu0
      %v3300 = vadd.f32 %v3231, %v3299
      %3301 = vmatmul.bf16.gmra.mxu0 %v1330
      %v3302 = vpop.f32.mrf.mxu0
      %v3303 = vadd.f32 %v3234, %v3302
      %v3304 = vpop.f32.mrf.mxu0
      %v3305 = vadd.f32 %v3236, %v3304
      %3306 = vmatmul.bf16.gmra.mxu0 %v1348
      %v3307 = vpop.f32.mrf.mxu0
      %v3308 = vadd.f32 %v3239, %v3307
      %v3309 = vpop.f32.mrf.mxu0
      %v3310 = vadd.f32 %v3241, %v3309
      %3311 = vmatmul.bf16.gmra.mxu0 %v1366
      %v3312 = vpop.f32.mrf.mxu0
      %v3313 = vadd.f32 %v3244, %v3312
      %v3314 = vpop.f32.mrf.mxu0
      %v3315 = vadd.f32 %v3246, %v3314
      %3316 = vmatmul.bf16.gmra.mxu0 %v1384
      %v3317 = vpop.f32.mrf.mxu0
      %v3318 = vadd.f32 %v3249, %v3317
      %v3319 = vpop.f32.mrf.mxu0
      %v3320 = vadd.f32 %v3251, %v3319
      %3321 = vmatmul.bf16.gmra.mxu0 %v1402
      %v3322 = vpop.f32.mrf.mxu0
      %v3323 = vadd.f32 %v3254, %v3322
      %v3324 = vpop.f32.mrf.mxu0
      %v3325 = vadd.f32 %v3256, %v3324
      %3326 = vmatmul.bf16.gmra.mxu0 %v1420
      %v3327 = vpop.f32.mrf.mxu0
      %v3328 = vadd.f32 %v3259, %v3327
      %v3329 = vpop.f32.mrf.mxu0
      %v3330 = vadd.f32 %v3261, %v3329
      %3331 = vmatmul.bf16.gmra.mxu0 %v1438
      %v3332 = vpop.f32.mrf.mxu0
      %v3333 = vadd.f32 %v3264, %v3332
      %v3334 = vpop.f32.mrf.mxu0
      %v3335 = vadd.f32 %v3266, %v3334
      %3336 = vmatmul.bf16.gmra.mxu0 %v1456
      %v3337 = vpop.f32.mrf.mxu0
      %v3338 = vadd.f32 %v3269, %v3337
      %v3339 = vpop.f32.mrf.mxu0
      %v3340 = vadd.f32 %v3271, %v3339
      %3341 = vmatmul.bf16.gmra.mxu0 %v1474
      %v3342 = vpop.f32.mrf.mxu0
      %v3343 = vadd.f32 %v3274, %v3342
      %v3344 = vpop.f32.mrf.mxu0
      %v3345 = vadd.f32 %v3276, %v3344
      %3346 = vmatmul.bf16.gmra.mxu0 %v1492
      %v3347 = vpop.f32.mrf.mxu0
      %v3348 = vadd.f32 %v3279, %v3347
      %v3349 = vpop.f32.mrf.mxu0
      %v3350 = vadd.f32 %v3281, %v3349
      %3351 = vmatmul.bf16.gmra.mxu0 %v1510
      %v3352 = vpop.f32.mrf.mxu0
      %v3353 = vadd.f32 %v3284, %v3352
      %v3354 = vpop.f32.mrf.mxu0
      %v3355 = vadd.f32 %v3286, %v3354
      %3356 = vdwg.mxu0
      %3357 = vmatpush.bf16.msra.mxu0 %v2405
      %3358 = vmatpush.bf16.msra.mxu0 %v2404
      %3359 = vmatpush.bf16.msra.mxu0 %v2403
      %3360 = vmatpush.bf16.msra.mxu0 %v2402
      %3361 = vmatpush.bf16.msra.mxu0 %v2401
      %3362 = vmatpush.bf16.msra.mxu0 %v2400
      %3363 = vmatpush.bf16.msra.mxu0 %v2399
      %3364 = vmatpush.bf16.msra.mxu0 %v2398
      %3365 = vmatmul.bf16.gmra.mxu0 %v1313
      %v3366 = vpop.f32.mrf.mxu0
      %v3367 = vadd.f32 %v3298, %v3366
      %v3368 = vpop.f32.mrf.mxu0
      %v3369 = vadd.f32 %v3300, %v3368
      %3370 = vmatmul.bf16.gmra.mxu0 %v1331
      %v3371 = vpop.f32.mrf.mxu0
      %v3372 = vadd.f32 %v3303, %v3371
      %v3373 = vpop.f32.mrf.mxu0
      %v3374 = vadd.f32 %v3305, %v3373
      %3375 = vmatmul.bf16.gmra.mxu0 %v1349
      %v3376 = vpop.f32.mrf.mxu0
      %v3377 = vadd.f32 %v3308, %v3376
      %v3378 = vpop.f32.mrf.mxu0
      %v3379 = vadd.f32 %v3310, %v3378
      %3380 = vmatmul.bf16.gmra.mxu0 %v1367
      %v3381 = vpop.f32.mrf.mxu0
      %v3382 = vadd.f32 %v3313, %v3381
      %v3383 = vpop.f32.mrf.mxu0
      %v3384 = vadd.f32 %v3315, %v3383
      %3385 = vmatmul.bf16.gmra.mxu0 %v1385
      %v3386 = vpop.f32.mrf.mxu0
      %v3387 = vadd.f32 %v3318, %v3386
      %v3388 = vpop.f32.mrf.mxu0
      %v3389 = vadd.f32 %v3320, %v3388
      %3390 = vmatmul.bf16.gmra.mxu0 %v1403
      %v3391 = vpop.f32.mrf.mxu0
      %v3392 = vadd.f32 %v3323, %v3391
      %v3393 = vpop.f32.mrf.mxu0
      %v3394 = vadd.f32 %v3325, %v3393
      %3395 = vmatmul.bf16.gmra.mxu0 %v1421
      %v3396 = vpop.f32.mrf.mxu0
      %v3397 = vadd.f32 %v3328, %v3396
      %v3398 = vpop.f32.mrf.mxu0
      %v3399 = vadd.f32 %v3330, %v3398
      %3400 = vmatmul.bf16.gmra.mxu0 %v1439
      %v3401 = vpop.f32.mrf.mxu0
      %v3402 = vadd.f32 %v3333, %v3401
      %v3403 = vpop.f32.mrf.mxu0
      %v3404 = vadd.f32 %v3335, %v3403
      %3405 = vmatmul.bf16.gmra.mxu0 %v1457
      %v3406 = vpop.f32.mrf.mxu0
      %v3407 = vadd.f32 %v3338, %v3406
      %v3408 = vpop.f32.mrf.mxu0
      %v3409 = vadd.f32 %v3340, %v3408
      %3410 = vmatmul.bf16.gmra.mxu0 %v1475
      %v3411 = vpop.f32.mrf.mxu0
      %v3412 = vadd.f32 %v3343, %v3411
      %v3413 = vpop.f32.mrf.mxu0
      %v3414 = vadd.f32 %v3345, %v3413
      %3415 = vmatmul.bf16.gmra.mxu0 %v1493
      %v3416 = vpop.f32.mrf.mxu0
      %v3417 = vadd.f32 %v3348, %v3416
      %v3418 = vpop.f32.mrf.mxu0
      %v3419 = vadd.f32 %v3350, %v3418
      %3420 = vmatmul.bf16.gmra.mxu0 %v1511
      %v3421 = vpop.f32.mrf.mxu0
      %v3422 = vadd.f32 %v3353, %v3421
      %v3423 = vpop.f32.mrf.mxu0
      %v3424 = vadd.f32 %v3355, %v3423
      %3425 = vdwg.mxu0
      %3426 = vmatpush.bf16.msra.mxu0 %v2413
      %3427 = vmatpush.bf16.msra.mxu0 %v2412
      %3428 = vmatpush.bf16.msra.mxu0 %v2411
      %3429 = vmatpush.bf16.msra.mxu0 %v2410
      %3430 = vmatpush.bf16.msra.mxu0 %v2409
      %3431 = vmatpush.bf16.msra.mxu0 %v2408
      %3432 = vmatpush.bf16.msra.mxu0 %v2407
      %3433 = vmatpush.bf16.msra.mxu0 %v2406
      %3434 = vmatmul.bf16.gmra.mxu0 %v1314
      %v3435 = vpop.f32.mrf.mxu0
      %v3436 = vadd.f32 %v3367, %v3435
      %v3437 = vpop.f32.mrf.mxu0
      %v3438 = vadd.f32 %v3369, %v3437
      %3439 = vmatmul.bf16.gmra.mxu0 %v1332
      %v3440 = vpop.f32.mrf.mxu0
      %v3441 = vadd.f32 %v3372, %v3440
      %v3442 = vpop.f32.mrf.mxu0
      %v3443 = vadd.f32 %v3374, %v3442
      %3444 = vmatmul.bf16.gmra.mxu0 %v1350
      %v3445 = vpop.f32.mrf.mxu0
      %v3446 = vadd.f32 %v3377, %v3445
      %v3447 = vpop.f32.mrf.mxu0
      %v3448 = vadd.f32 %v3379, %v3447
      %3449 = vmatmul.bf16.gmra.mxu0 %v1368
      %v3450 = vpop.f32.mrf.mxu0
      %v3451 = vadd.f32 %v3382, %v3450
      %v3452 = vpop.f32.mrf.mxu0
      %v3453 = vadd.f32 %v3384, %v3452
      %3454 = vmatmul.bf16.gmra.mxu0 %v1386
      %v3455 = vpop.f32.mrf.mxu0
      %v3456 = vadd.f32 %v3387, %v3455
      %v3457 = vpop.f32.mrf.mxu0
      %v3458 = vadd.f32 %v3389, %v3457
      %3459 = vmatmul.bf16.gmra.mxu0 %v1404
      %v3460 = vpop.f32.mrf.mxu0
      %v3461 = vadd.f32 %v3392, %v3460
      %v3462 = vpop.f32.mrf.mxu0
      %v3463 = vadd.f32 %v3394, %v3462
      %3464 = vmatmul.bf16.gmra.mxu0 %v1422
      %v3465 = vpop.f32.mrf.mxu0
      %v3466 = vadd.f32 %v3397, %v3465
      %v3467 = vpop.f32.mrf.mxu0
      %v3468 = vadd.f32 %v3399, %v3467
      %3469 = vmatmul.bf16.gmra.mxu0 %v1440
      %v3470 = vpop.f32.mrf.mxu0
      %v3471 = vadd.f32 %v3402, %v3470
      %v3472 = vpop.f32.mrf.mxu0
      %v3473 = vadd.f32 %v3404, %v3472
      %3474 = vmatmul.bf16.gmra.mxu0 %v1458
      %v3475 = vpop.f32.mrf.mxu0
      %v3476 = vadd.f32 %v3407, %v3475
      %v3477 = vpop.f32.mrf.mxu0
      %v3478 = vadd.f32 %v3409, %v3477
      %3479 = vmatmul.bf16.gmra.mxu0 %v1476
      %v3480 = vpop.f32.mrf.mxu0
      %v3481 = vadd.f32 %v3412, %v3480
      %v3482 = vpop.f32.mrf.mxu0
      %v3483 = vadd.f32 %v3414, %v3482
      %3484 = vmatmul.bf16.gmra.mxu0 %v1494
      %v3485 = vpop.f32.mrf.mxu0
      %v3486 = vadd.f32 %v3417, %v3485
      %v3487 = vpop.f32.mrf.mxu0
      %v3488 = vadd.f32 %v3419, %v3487
      %3489 = vmatmul.bf16.gmra.mxu0 %v1512
      %v3490 = vpop.f32.mrf.mxu0
      %v3491 = vadd.f32 %v3422, %v3490
      %v3492 = vpop.f32.mrf.mxu0
      %v3493 = vadd.f32 %v3424, %v3492
      %3494 = vdwg.mxu0
      %3495 = vmatpush.bf16.msra.mxu0 %v2421
      %3496 = vmatpush.bf16.msra.mxu0 %v2420
      %3497 = vmatpush.bf16.msra.mxu0 %v2419
      %3498 = vmatpush.bf16.msra.mxu0 %v2418
      %3499 = vmatpush.bf16.msra.mxu0 %v2417
      %3500 = vmatpush.bf16.msra.mxu0 %v2416
      %3501 = vmatpush.bf16.msra.mxu0 %v2415
      %3502 = vmatpush.bf16.msra.mxu0 %v2414
      %3503 = vmatmul.bf16.gmra.mxu0 %v1315
      %v3504 = vpop.f32.mrf.mxu0
      %v3505 = vadd.f32 %v3436, %v3504
      %v3506 = vpop.f32.mrf.mxu0
      %v3507 = vadd.f32 %v3438, %v3506
      %3508 = vmatmul.bf16.gmra.mxu0 %v1333
      %v3509 = vpop.f32.mrf.mxu0
      %v3510 = vadd.f32 %v3441, %v3509
      %v3511 = vpop.f32.mrf.mxu0
      %v3512 = vadd.f32 %v3443, %v3511
      %3513 = vmatmul.bf16.gmra.mxu0 %v1351
      %v3514 = vpop.f32.mrf.mxu0
      %v3515 = vadd.f32 %v3446, %v3514
      %v3516 = vpop.f32.mrf.mxu0
      %v3517 = vadd.f32 %v3448, %v3516
      %3518 = vmatmul.bf16.gmra.mxu0 %v1369
      %v3519 = vpop.f32.mrf.mxu0
      %v3520 = vadd.f32 %v3451, %v3519
      %v3521 = vpop.f32.mrf.mxu0
      %v3522 = vadd.f32 %v3453, %v3521
      %3523 = vmatmul.bf16.gmra.mxu0 %v1387
      %v3524 = vpop.f32.mrf.mxu0
      %v3525 = vadd.f32 %v3456, %v3524
      %v3526 = vpop.f32.mrf.mxu0
      %v3527 = vadd.f32 %v3458, %v3526
      %3528 = vmatmul.bf16.gmra.mxu0 %v1405
      %v3529 = vpop.f32.mrf.mxu0
      %v3530 = vadd.f32 %v3461, %v3529
      %v3531 = vpop.f32.mrf.mxu0
      %v3532 = vadd.f32 %v3463, %v3531
      %3533 = vmatmul.bf16.gmra.mxu0 %v1423
      %v3534 = vpop.f32.mrf.mxu0
      %v3535 = vadd.f32 %v3466, %v3534
      %v3536 = vpop.f32.mrf.mxu0
      %v3537 = vadd.f32 %v3468, %v3536
      %3538 = vmatmul.bf16.gmra.mxu0 %v1441
      %v3539 = vpop.f32.mrf.mxu0
      %v3540 = vadd.f32 %v3471, %v3539
      %v3541 = vpop.f32.mrf.mxu0
      %v3542 = vadd.f32 %v3473, %v3541
      %3543 = vmatmul.bf16.gmra.mxu0 %v1459
      %v3544 = vpop.f32.mrf.mxu0
      %v3545 = vadd.f32 %v3476, %v3544
      %v3546 = vpop.f32.mrf.mxu0
      %v3547 = vadd.f32 %v3478, %v3546
      %3548 = vmatmul.bf16.gmra.mxu0 %v1477
      %v3549 = vpop.f32.mrf.mxu0
      %v3550 = vadd.f32 %v3481, %v3549
      %v3551 = vpop.f32.mrf.mxu0
      %v3552 = vadd.f32 %v3483, %v3551
      %3553 = vmatmul.bf16.gmra.mxu0 %v1495
      %v3554 = vpop.f32.mrf.mxu0
      %v3555 = vadd.f32 %v3486, %v3554
      %v3556 = vpop.f32.mrf.mxu0
      %v3557 = vadd.f32 %v3488, %v3556
      %3558 = vmatmul.bf16.gmra.mxu0 %v1513
      %v3559 = vpop.f32.mrf.mxu0
      %v3560 = vadd.f32 %v3491, %v3559
      %v3561 = vpop.f32.mrf.mxu0
      %v3562 = vadd.f32 %v3493, %v3561
      %3563 = vdwg.mxu0
      %3564 = vmatpush.bf16.msra.mxu0 %v2429
      %3565 = vmatpush.bf16.msra.mxu0 %v2428
      %3566 = vmatpush.bf16.msra.mxu0 %v2427
      %3567 = vmatpush.bf16.msra.mxu0 %v2426
      %3568 = vmatpush.bf16.msra.mxu0 %v2425
      %3569 = vmatpush.bf16.msra.mxu0 %v2424
      %3570 = vmatpush.bf16.msra.mxu0 %v2423
      %3571 = vmatpush.bf16.msra.mxu0 %v2422
      %3572 = vmatmul.bf16.gmra.mxu0 %v1316
      %v3573 = vpop.f32.mrf.mxu0
      %v3574 = vadd.f32 %v3505, %v3573
      %v3575 = vpop.f32.mrf.mxu0
      %v3576 = vadd.f32 %v3507, %v3575
      %3577 = vmatmul.bf16.gmra.mxu0 %v1334
      %v3578 = vpop.f32.mrf.mxu0
      %v3579 = vadd.f32 %v3510, %v3578
      %v3580 = vpop.f32.mrf.mxu0
      %v3581 = vadd.f32 %v3512, %v3580
      %3582 = vmatmul.bf16.gmra.mxu0 %v1352
      %v3583 = vpop.f32.mrf.mxu0
      %v3584 = vadd.f32 %v3515, %v3583
      %v3585 = vpop.f32.mrf.mxu0
      %v3586 = vadd.f32 %v3517, %v3585
      %3587 = vmatmul.bf16.gmra.mxu0 %v1370
      %v3588 = vpop.f32.mrf.mxu0
      %v3589 = vadd.f32 %v3520, %v3588
      %v3590 = vpop.f32.mrf.mxu0
      %v3591 = vadd.f32 %v3522, %v3590
      %3592 = vmatmul.bf16.gmra.mxu0 %v1388
      %v3593 = vpop.f32.mrf.mxu0
      %v3594 = vadd.f32 %v3525, %v3593
      %v3595 = vpop.f32.mrf.mxu0
      %v3596 = vadd.f32 %v3527, %v3595
      %3597 = vmatmul.bf16.gmra.mxu0 %v1406
      %v3598 = vpop.f32.mrf.mxu0
      %v3599 = vadd.f32 %v3530, %v3598
      %v3600 = vpop.f32.mrf.mxu0
      %v3601 = vadd.f32 %v3532, %v3600
      %3602 = vmatmul.bf16.gmra.mxu0 %v1424
      %v3603 = vpop.f32.mrf.mxu0
      %v3604 = vadd.f32 %v3535, %v3603
      %v3605 = vpop.f32.mrf.mxu0
      %v3606 = vadd.f32 %v3537, %v3605
      %3607 = vmatmul.bf16.gmra.mxu0 %v1442
      %v3608 = vpop.f32.mrf.mxu0
      %v3609 = vadd.f32 %v3540, %v3608
      %v3610 = vpop.f32.mrf.mxu0
      %v3611 = vadd.f32 %v3542, %v3610
      %3612 = vmatmul.bf16.gmra.mxu0 %v1460
      %v3613 = vpop.f32.mrf.mxu0
      %v3614 = vadd.f32 %v3545, %v3613
      %v3615 = vpop.f32.mrf.mxu0
      %v3616 = vadd.f32 %v3547, %v3615
      %3617 = vmatmul.bf16.gmra.mxu0 %v1478
      %v3618 = vpop.f32.mrf.mxu0
      %v3619 = vadd.f32 %v3550, %v3618
      %v3620 = vpop.f32.mrf.mxu0
      %v3621 = vadd.f32 %v3552, %v3620
      %3622 = vmatmul.bf16.gmra.mxu0 %v1496
      %v3623 = vpop.f32.mrf.mxu0
      %v3624 = vadd.f32 %v3555, %v3623
      %v3625 = vpop.f32.mrf.mxu0
      %v3626 = vadd.f32 %v3557, %v3625
      %3627 = vmatmul.bf16.gmra.mxu0 %v1514
      %v3628 = vpop.f32.mrf.mxu0
      %v3629 = vadd.f32 %v3560, %v3628
      %v3630 = vpop.f32.mrf.mxu0
      %v3631 = vadd.f32 %v3562, %v3630
      %3632 = vdwg.mxu0
      %3633 = vmatpush.bf16.msra.mxu0 %v2437
      %3634 = vmatpush.bf16.msra.mxu0 %v2436
      %3635 = vmatpush.bf16.msra.mxu0 %v2435
      %3636 = vmatpush.bf16.msra.mxu0 %v2434
      %3637 = vmatpush.bf16.msra.mxu0 %v2433
      %3638 = vmatpush.bf16.msra.mxu0 %v2432
      %3639 = vmatpush.bf16.msra.mxu0 %v2431
      %3640 = vmatpush.bf16.msra.mxu0 %v2430
      %3641 = vmatmul.bf16.gmra.mxu0 %v1317
      %v3642 = vpop.f32.mrf.mxu0
      %v3643 = vadd.f32 %v3574, %v3642
      %v3644 = vpop.f32.mrf.mxu0
      %v3645 = vadd.f32 %v3576, %v3644
      %3646 = vmatmul.bf16.gmra.mxu0 %v1335
      %v3647 = vpop.f32.mrf.mxu0
      %v3648 = vadd.f32 %v3579, %v3647
      %v3649 = vpop.f32.mrf.mxu0
      %v3650 = vadd.f32 %v3581, %v3649
      %3651 = vmatmul.bf16.gmra.mxu0 %v1353
      %v3652 = vpop.f32.mrf.mxu0
      %v3653 = vadd.f32 %v3584, %v3652
      %v3654 = vpop.f32.mrf.mxu0
      %v3655 = vadd.f32 %v3586, %v3654
      %3656 = vmatmul.bf16.gmra.mxu0 %v1371
      %v3657 = vpop.f32.mrf.mxu0
      %v3658 = vadd.f32 %v3589, %v3657
      %v3659 = vpop.f32.mrf.mxu0
      %v3660 = vadd.f32 %v3591, %v3659
      %3661 = vmatmul.bf16.gmra.mxu0 %v1389
      %v3662 = vpop.f32.mrf.mxu0
      %v3663 = vadd.f32 %v3594, %v3662
      %v3664 = vpop.f32.mrf.mxu0
      %v3665 = vadd.f32 %v3596, %v3664
      %3666 = vmatmul.bf16.gmra.mxu0 %v1407
      %v3667 = vpop.f32.mrf.mxu0
      %v3668 = vadd.f32 %v3599, %v3667
      %v3669 = vpop.f32.mrf.mxu0
      %v3670 = vadd.f32 %v3601, %v3669
      %3671 = vmatmul.bf16.gmra.mxu0 %v1425
      %v3672 = vpop.f32.mrf.mxu0
      %v3673 = vadd.f32 %v3604, %v3672
      %v3674 = vpop.f32.mrf.mxu0
      %v3675 = vadd.f32 %v3606, %v3674
      %3676 = vmatmul.bf16.gmra.mxu0 %v1443
      %v3677 = vpop.f32.mrf.mxu0
      %v3678 = vadd.f32 %v3609, %v3677
      %v3679 = vpop.f32.mrf.mxu0
      %v3680 = vadd.f32 %v3611, %v3679
      %3681 = vmatmul.bf16.gmra.mxu0 %v1461
      %v3682 = vpop.f32.mrf.mxu0
      %v3683 = vadd.f32 %v3614, %v3682
      %v3684 = vpop.f32.mrf.mxu0
      %v3685 = vadd.f32 %v3616, %v3684
      %3686 = vmatmul.bf16.gmra.mxu0 %v1479
      %v3687 = vpop.f32.mrf.mxu0
      %v3688 = vadd.f32 %v3619, %v3687
      %v3689 = vpop.f32.mrf.mxu0
      %v3690 = vadd.f32 %v3621, %v3689
      %3691 = vmatmul.bf16.gmra.mxu0 %v1497
      %v3692 = vpop.f32.mrf.mxu0
      %v3693 = vadd.f32 %v3624, %v3692
      %v3694 = vpop.f32.mrf.mxu0
      %v3695 = vadd.f32 %v3626, %v3694
      %3696 = vmatmul.bf16.gmra.mxu0 %v1515
      %v3697 = vpop.f32.mrf.mxu0
      %v3698 = vadd.f32 %v3629, %v3697
      %v3699 = vpop.f32.mrf.mxu0
      %v3700 = vadd.f32 %v3631, %v3699
      %3701 = vdwg.mxu0
      %3702 = vmatpush.bf16.msra.mxu0 %v2445
      %3703 = vmatpush.bf16.msra.mxu0 %v2444
      %3704 = vmatpush.bf16.msra.mxu0 %v2443
      %3705 = vmatpush.bf16.msra.mxu0 %v2442
      %3706 = vmatpush.bf16.msra.mxu0 %v2441
      %3707 = vmatpush.bf16.msra.mxu0 %v2440
      %3708 = vmatpush.bf16.msra.mxu0 %v2439
      %3709 = vmatpush.bf16.msra.mxu0 %v2438
      %3710 = vmatmul.bf16.gmra.mxu0 %v1318
      %v3711 = vpop.f32.mrf.mxu0
      %v3712 = vadd.f32 %v3643, %v3711
      %v3713 = vpop.f32.mrf.mxu0
      %v3714 = vadd.f32 %v3645, %v3713
      %3715 = vmatmul.bf16.gmra.mxu0 %v1336
      %v3716 = vpop.f32.mrf.mxu0
      %v3717 = vadd.f32 %v3648, %v3716
      %v3718 = vpop.f32.mrf.mxu0
      %v3719 = vadd.f32 %v3650, %v3718
      %3720 = vmatmul.bf16.gmra.mxu0 %v1354
      %v3721 = vpop.f32.mrf.mxu0
      %v3722 = vadd.f32 %v3653, %v3721
      %v3723 = vpop.f32.mrf.mxu0
      %v3724 = vadd.f32 %v3655, %v3723
      %3725 = vmatmul.bf16.gmra.mxu0 %v1372
      %v3726 = vpop.f32.mrf.mxu0
      %v3727 = vadd.f32 %v3658, %v3726
      %v3728 = vpop.f32.mrf.mxu0
      %v3729 = vadd.f32 %v3660, %v3728
      %3730 = vmatmul.bf16.gmra.mxu0 %v1390
      %v3731 = vpop.f32.mrf.mxu0
      %v3732 = vadd.f32 %v3663, %v3731
      %v3733 = vpop.f32.mrf.mxu0
      %v3734 = vadd.f32 %v3665, %v3733
      %3735 = vmatmul.bf16.gmra.mxu0 %v1408
      %v3736 = vpop.f32.mrf.mxu0
      %v3737 = vadd.f32 %v3668, %v3736
      %v3738 = vpop.f32.mrf.mxu0
      %v3739 = vadd.f32 %v3670, %v3738
      %3740 = vmatmul.bf16.gmra.mxu0 %v1426
      %v3741 = vpop.f32.mrf.mxu0
      %v3742 = vadd.f32 %v3673, %v3741
      %v3743 = vpop.f32.mrf.mxu0
      %v3744 = vadd.f32 %v3675, %v3743
      %3745 = vmatmul.bf16.gmra.mxu0 %v1444
      %v3746 = vpop.f32.mrf.mxu0
      %v3747 = vadd.f32 %v3678, %v3746
      %v3748 = vpop.f32.mrf.mxu0
      %v3749 = vadd.f32 %v3680, %v3748
      %3750 = vmatmul.bf16.gmra.mxu0 %v1462
      %v3751 = vpop.f32.mrf.mxu0
      %v3752 = vadd.f32 %v3683, %v3751
      %v3753 = vpop.f32.mrf.mxu0
      %v3754 = vadd.f32 %v3685, %v3753
      %3755 = vmatmul.bf16.gmra.mxu0 %v1480
      %v3756 = vpop.f32.mrf.mxu0
      %v3757 = vadd.f32 %v3688, %v3756
      %v3758 = vpop.f32.mrf.mxu0
      %v3759 = vadd.f32 %v3690, %v3758
      %3760 = vmatmul.bf16.gmra.mxu0 %v1498
      %v3761 = vpop.f32.mrf.mxu0
      %v3762 = vadd.f32 %v3693, %v3761
      %v3763 = vpop.f32.mrf.mxu0
      %v3764 = vadd.f32 %v3695, %v3763
      %3765 = vmatmul.bf16.gmra.mxu0 %v1516
      %v3766 = vpop.f32.mrf.mxu0
      %v3767 = vadd.f32 %v3698, %v3766
      %v3768 = vpop.f32.mrf.mxu0
      %v3769 = vadd.f32 %v3700, %v3768
      %3770 = vdwg.mxu0
      %3771 = vmatpush.bf16.msra.mxu0 %v2453
      %3772 = vmatpush.bf16.msra.mxu0 %v2452
      %3773 = vmatpush.bf16.msra.mxu0 %v2451
      %3774 = vmatpush.bf16.msra.mxu0 %v2450
      %3775 = vmatpush.bf16.msra.mxu0 %v2449
      %3776 = vmatpush.bf16.msra.mxu0 %v2448
      %3777 = vmatpush.bf16.msra.mxu0 %v2447
      %3778 = vmatpush.bf16.msra.mxu0 %v2446
      %3779 = vmatmul.bf16.gmra.mxu0 %v1319
      %v3780 = vpop.f32.mrf.mxu0
      %v3781 = vadd.f32 %v3712, %v3780
      %v3782 = vpop.f32.mrf.mxu0
      %v3783 = vadd.f32 %v3714, %v3782
      %3784 = vmatmul.bf16.gmra.mxu0 %v1337
      %v3785 = vpop.f32.mrf.mxu0
      %v3786 = vadd.f32 %v3717, %v3785
      %v3787 = vpop.f32.mrf.mxu0
      %v3788 = vadd.f32 %v3719, %v3787
      %3789 = vmatmul.bf16.gmra.mxu0 %v1355
      %v3790 = vpop.f32.mrf.mxu0
      %v3791 = vadd.f32 %v3722, %v3790
      %v3792 = vpop.f32.mrf.mxu0
      %v3793 = vadd.f32 %v3724, %v3792
      %3794 = vmatmul.bf16.gmra.mxu0 %v1373
      %v3795 = vpop.f32.mrf.mxu0
      %v3796 = vadd.f32 %v3727, %v3795
      %v3797 = vpop.f32.mrf.mxu0
      %v3798 = vadd.f32 %v3729, %v3797
      %3799 = vmatmul.bf16.gmra.mxu0 %v1391
      %v3800 = vpop.f32.mrf.mxu0
      %v3801 = vadd.f32 %v3732, %v3800
      %v3802 = vpop.f32.mrf.mxu0
      %v3803 = vadd.f32 %v3734, %v3802
      %3804 = vmatmul.bf16.gmra.mxu0 %v1409
      %v3805 = vpop.f32.mrf.mxu0
      %v3806 = vadd.f32 %v3737, %v3805
      %v3807 = vpop.f32.mrf.mxu0
      %v3808 = vadd.f32 %v3739, %v3807
      %3809 = vmatmul.bf16.gmra.mxu0 %v1427
      %v3810 = vpop.f32.mrf.mxu0
      %v3811 = vadd.f32 %v3742, %v3810
      %v3812 = vpop.f32.mrf.mxu0
      %v3813 = vadd.f32 %v3744, %v3812
      %3814 = vmatmul.bf16.gmra.mxu0 %v1445
      %v3815 = vpop.f32.mrf.mxu0
      %v3816 = vadd.f32 %v3747, %v3815
      %v3817 = vpop.f32.mrf.mxu0
      %v3818 = vadd.f32 %v3749, %v3817
      %3819 = vmatmul.bf16.gmra.mxu0 %v1463
      %v3820 = vpop.f32.mrf.mxu0
      %v3821 = vadd.f32 %v3752, %v3820
      %v3822 = vpop.f32.mrf.mxu0
      %v3823 = vadd.f32 %v3754, %v3822
      %3824 = vmatmul.bf16.gmra.mxu0 %v1481
      %v3825 = vpop.f32.mrf.mxu0
      %v3826 = vadd.f32 %v3757, %v3825
      %v3827 = vpop.f32.mrf.mxu0
      %v3828 = vadd.f32 %v3759, %v3827
      %3829 = vmatmul.bf16.gmra.mxu0 %v1499
      %v3830 = vpop.f32.mrf.mxu0
      %v3831 = vadd.f32 %v3762, %v3830
      %v3832 = vpop.f32.mrf.mxu0
      %v3833 = vadd.f32 %v3764, %v3832
      %3834 = vmatmul.bf16.gmra.mxu0 %v1517
      %v3835 = vpop.f32.mrf.mxu0
      %v3836 = vadd.f32 %v3767, %v3835
      %v3837 = vpop.f32.mrf.mxu0
      %v3838 = vadd.f32 %v3769, %v3837
      %3839 = vdwg.mxu0
      %vm3840 = vcmask 400384
      %3841 = vst.msk [vmem:[%s148] sm:$0xff] %vm3840, %v3781
      %3842 = vst.msk [vmem:[%s148 + $0x8] sm:$0xff] %vm3840, %v3783
      %3843 = vst.msk [vmem:[%s148 + $0x10] sm:$0xff] %vm3840, %v3786
      %3844 = vst.msk [vmem:[%s148 + $0x18] sm:$0xff] %vm3840, %v3788
      %3845 = vst.msk [vmem:[%s148 + $0x20] sm:$0xff] %vm3840, %v3791
      %3846 = vst.msk [vmem:[%s148 + $0x28] sm:$0xff] %vm3840, %v3793
      %3847 = vst.msk [vmem:[%s148 + $0x30] sm:$0xff] %vm3840, %v3796
      %3848 = vst.msk [vmem:[%s148 + $0x38] sm:$0xff] %vm3840, %v3798
      %3849 = vst.msk [vmem:[%s148 + $0x40] sm:$0xff] %vm3840, %v3801
      %3850 = vst.msk [vmem:[%s148 + $0x48] sm:$0xff] %vm3840, %v3803
      %3851 = vst.msk [vmem:[%s148 + $0x50] sm:$0xff] %vm3840, %v3806
      %3852 = vst.msk [vmem:[%s148 + $0x58] sm:$0xff] %vm3840, %v3808
      %3853 = vst.msk [vmem:[%s148 + $0x60] sm:$0xff] %vm3840, %v3811
      %3854 = vst.msk [vmem:[%s148 + $0x68] sm:$0xff] %vm3840, %v3813
      %3855 = vst.msk [vmem:[%s148 + $0x70] sm:$0xff] %vm3840, %v3816
      %3856 = vst.msk [vmem:[%s148 + $0x78] sm:$0xff] %vm3840, %v3818
      %3857 = vst.msk [vmem:[%s148 + $0x80] sm:$0xff] %vm3840, %v3821
      %3858 = vst.msk [vmem:[%s148 + $0x88] sm:$0xff] %vm3840, %v3823
      %3859 = vst.msk [vmem:[%s148 + $0x90] sm:$0xff] %vm3840, %v3826
      %3860 = vst.msk [vmem:[%s148 + $0x98] sm:$0xff] %vm3840, %v3828
      %3861 = vst.msk [vmem:[%s148 + $0xa0] sm:$0xff] %vm3840, %v3831
      %3862 = vst.msk [vmem:[%s148 + $0xa8] sm:$0xff] %vm3840, %v3833
      %3863 = vst.msk [vmem:[%s148 + $0xb0] sm:$0xff] %vm3840, %v3836
      %3864 = vst.msk [vmem:[%s148 + $0xb8] sm:$0xff] %vm3840, %v3838
      %s3865 = smul.u32 24, %s13
      %p3866 = scmp.lt.s32.totalorder %s3865, 47
      %s3867 = scalar_select %p3866, %s3865, 47
      %s3868 = smul.addr %s3867, 8
      %s3869 = scalar_lea.vmem %s2, %s3868
      // Predicated region
      $region29: #{conv1x1.1} parent=27 // pred_check
        %p3870 = pneg %p78
      $region30: #{conv1x1.1} parent=27 // pred_check_branch
        %3872 = sbr.rel (%p3870) target = $region32
      $region31: #{conv1x1.1} parent=27 // pred_region
        %s3873 = smul.u32 24, %s13
      $region32: #{conv1x1.1} parent=27 // pred_fallthru
        _
    $region28: #{conv1x1.1} parent=5 // pred_fallthru
      _
    %p3874 = scmp.le.s32.totalorder 2, %s8
    // Predicated region
    $region33: #{conv1x1.1} parent=5 // pred_check
      %p3875 = pneg %p3874
    $region34: #{conv1x1.1} parent=5 // pred_check_branch
      %3877 = sbr.rel (%p3875) target = $region36
    $region35: #{conv1x1.1} parent=5 // pred_region
      %s3878 = ssub.s32 %s8, 2
      // Predicated region
      $region37: #{conv1x1.1} parent=35 // pred_check
        %p3879 = pneg %p84
      $region38: #{conv1x1.1} parent=35 // pred_check_branch
        %3881 = sbr.rel (%p3879) target = $region40
      $region39: #{conv1x1.1} parent=35 // pred_region
        %s3882 = smul.u32 24, %s14
        %p3883 = scmp.lt.s32.totalorder %s3882, 47
        %s3884 = scalar_select %p3883, %s3882, 47
        %s3885 = smul.addr %s3884, 8
        %s3886 = scalar_lea.vmem %s2, %s3885
      $region40: #{conv1x1.1} parent=35 // pred_fallthru
        _
    $region36: #{conv1x1.1} parent=5 // pred_fallthru
      _
  $region6: #{conv1x1.1} parent=0 // loop_footer
    %s12 = sadd.s32 1, %s8
  $region7: #{conv1x1.1} parent=0 // loop_footer_branch
    %7 = sbr.rel target = $region3
  $region8: #{conv1x1.1} parent=0 // loop_exit
    _

</llo_original>
